<compile_context>
chip_gen: v6e
topology: v6e:2x2x1
jax: 0.10.0
libtpu: 0.0.40
codegen_flags: <defaults>
</compile_context>

<pallas_src>
import jax
import jax.numpy as jnp
from jax.experimental import pallas as pl
from jax.experimental.pallas import tpu as pltpu

HIDDEN = 512
N_CLASSES = 10
N_OUT_PAD = 128  # lane-dense padded output width


def _round_up(x, m):
    return ((x + m - 1) // m) * m


def _cdiv(a, b):
    return (a + b - 1) // b


def _mlp_kernel(x_ref,
                w1_ref, b1_ref,
                w2_ref, b2_ref,
                w3_ref, b3_ref,
                w4_ref, b4_ref,
                o_ref):
    # x is already bf16 (cast in the wrapper); MXU accumulates in f32;
    # bias-add / ReLU stay in f32 (no bf16 VPU on v5e).
    x = x_ref[...]

    # Layer 1: Linear(n_z, 512)   (Dropout -> identity in eval)
    h = jnp.dot(x, w1_ref[...], preferred_element_type=jnp.float32) + b1_ref[...]

    # Layer 2: Linear(512, 512) + ReLU   (Dropout -> identity in eval)
    h = jnp.dot(h.astype(jnp.bfloat16), w2_ref[...],
                preferred_element_type=jnp.float32) + b2_ref[...]
    h = jnp.maximum(h, 0.0)

    # Layer 3: Linear(512, 512) + ReLU
    h = jnp.dot(h.astype(jnp.bfloat16), w3_ref[...],
                preferred_element_type=jnp.float32) + b3_ref[...]
    h = jnp.maximum(h, 0.0)

    # Layer 4: Linear(512, 10)  (columns zero-padded to 128 in the wrapper)
    out = jnp.dot(h.astype(jnp.bfloat16), w4_ref[...],
                  preferred_element_type=jnp.float32) + b4_ref[...]
    o_ref[...] = out.astype(o_ref.dtype)  # lane-dense bf16 store


def small_cnn_forward(x, params, *, tm_max=512, core_parallel=False):
    """x: (B, n_z) float32. params: dict of f32 W/b arrays. Returns (B, 10) f32.

    tm_max: cap on the batch tile (512 default; v5e's 128-wide MXU is already
            full at 128 but the bigger tile still amortizes step overhead).
    core_parallel: set True on v7x (2 TensorCores) to shard the batch grid
            axis across cores via pltpu.CORE_PARALLEL.
    """
    B, n_z = x.shape

    # Adaptive batch tile: multiple of 16 (bf16 sublane packing), chosen so
    # padding waste is at most ~one sublane group, not a whole tile.
    n_tiles = _cdiv(max(B, 1), max(16, tm_max))
    tm = _round_up(_cdiv(max(B, 1), n_tiles), 16)
    Bp = _round_up(max(B, 1), tm)

    # bf16 activation stream in; pad batch rows with zeros.
    x = x.astype(jnp.bfloat16)
    if Bp != B:
        x = jnp.pad(x, ((0, Bp - B), (0, 0)))

    # bf16 weights (halve weight DMA); f32 biases (VPU adds stay f32).
    w1 = params["w1"].astype(jnp.bfloat16)
    w2 = params["w2"].astype(jnp.bfloat16)
    w3 = params["w3"].astype(jnp.bfloat16)
    b1 = params["b1"].astype(jnp.float32)
    b2 = params["b2"].astype(jnp.float32)
    b3 = params["b3"].astype(jnp.float32)

    # Zero-pad the last layer to a lane-dense 128-wide output.
    w4 = jnp.pad(params["w4"], ((0, 0), (0, N_OUT_PAD - N_CLASSES))).astype(jnp.bfloat16)
    b4 = jnp.pad(params["b4"], ((0, 0), (0, N_OUT_PAD - N_CLASSES))).astype(jnp.float32)

    grid = (Bp // tm,)

    # Weights/biases: constant index_map -> fetched once, resident across tiles.
    const_spec = lambda a: pl.BlockSpec(a.shape, lambda i: (0, 0))

    dim_sem = (pltpu.CORE_PARALLEL,) if core_parallel else ("parallel",)

    flops = 2 * Bp * (n_z * HIDDEN + HIDDEN * HIDDEN * 2 + HIDDEN * N_OUT_PAD)
    bytes_accessed = (
        sum(int(a.size) * a.dtype.itemsize for a in (w1, w2, w3, w4, b1, b2, b3, b4))
        + Bp * n_z * 2 + Bp * N_OUT_PAD * 2  # bf16 in / bf16 out streams
    )

    out = pl.pallas_call(
        _mlp_kernel,
        out_shape=jax.ShapeDtypeStruct((Bp, N_OUT_PAD), jnp.bfloat16),
        grid_spec=pltpu.PrefetchScalarGridSpec(
            num_scalar_prefetch=0,
            grid=grid,
            in_specs=[
                pl.BlockSpec((tm, n_z), lambda i: (i, 0)),   # x: batch-tiled
                const_spec(w1), const_spec(b1),
                const_spec(w2), const_spec(b2),
                const_spec(w3), const_spec(b3),
                const_spec(w4), const_spec(b4),
            ],
            out_specs=pl.BlockSpec((tm, N_OUT_PAD), lambda i: (i, 0)),
        ),
        compiler_params=pltpu.CompilerParams(
            dimension_semantics=dim_sem,
        ),
        cost_estimate=pl.CostEstimate(
            flops=flops, transcendentals=0, bytes_accessed=bytes_accessed),
    )(x, w1, b1, w2, b2, w3, b3, w4, b4)

    return out[:B, :N_CLASSES].astype(jnp.float32)


def init_params(key, n_z):
    """Deterministic parameter init matching the nn.Linear shapes (f32 master)."""
    ks = jax.random.split(key, 8)

    def linear(kw, kb, fan_in, fan_out):
        bound = 1.0 / jnp.sqrt(fan_in)
        w = jax.random.uniform(kw, (fan_in, fan_out), jnp.float32, -bound, bound)
        b = jax.random.uniform(kb, (1, fan_out), jnp.float32, -bound, bound)
        return w, b

    w1, b1 = linear(ks[0], ks[1], n_z, HIDDEN)
    w2, b2 = linear(ks[2], ks[3], HIDDEN, HIDDEN)
    w3, b3 = linear(ks[4], ks[5], HIDDEN, HIDDEN)
    w4, b4 = linear(ks[6], ks[7], HIDDEN, N_CLASSES)
    return {"w1": w1, "b1": b1, "w2": w2, "b2": b2,
            "w3": w3, "b3": b3, "w4": w4, "b4": b4}


def reference_forward_f32(x, p):
    h = x @ p["w1"] + p["b1"]
    h = jnp.maximum(h @ p["w2"] + p["b2"], 0.0)
    h = jnp.maximum(h @ p["w3"] + p["b3"], 0.0)
    return h @ p["w4"] + p["b4"]


def reference_forward_bf16(x, p):
    """Same bf16-weight / bf16-activation / f32-accumulate path as the kernel."""
    bf = jnp.bfloat16
    h = jnp.dot(x.astype(bf), p["w1"].astype(bf),
                preferred_element_type=jnp.float32) + p["b1"]
    h = jnp.dot(h.astype(bf), p["w2"].astype(bf),
                preferred_element_type=jnp.float32) + p["b2"]
    h = jnp.maximum(h, 0.0)
    h = jnp.dot(h.astype(bf), p["w3"].astype(bf),
                preferred_element_type=jnp.float32) + p["b3"]
    h = jnp.maximum(h, 0.0)
    out = jnp.dot(h.astype(bf), p["w4"].astype(bf),
                  preferred_element_type=jnp.float32) + p["b4"]
    return out.astype(bf).astype(jnp.float32)  # kernel stores bf16


if __name__ == "__main__":
    key = jax.random.PRNGKey(0)
    k_x, k_p, k_x2 = jax.random.split(key, 3)

    B, n_z = 8, 32
    x = jax.random.normal(k_x, (B, n_z), jnp.float32)
    params = init_params(k_p, n_z)

    out = small_cnn_forward(x, params)
    out = jax.block_until_ready(out)
    assert out.shape == (B, N_CLASSES)

    # Correctness vs the same bf16 precision path (tight tolerance).
    ref_bf16 = reference_forward_bf16(x, params)
    assert jnp.allclose(out, ref_bf16, atol=5e-3, rtol=5e-3), "mismatch vs bf16 reference"

    # Sanity vs the full-f32 PyTorch semantics (tolerance relaxed for bf16 casts).
    ref_f32 = reference_forward_f32(x, params)
    assert jnp.allclose(out, ref_f32, atol=5e-2, rtol=5e-2), "mismatch vs f32 reference"

    # Second, ragged batch to exercise the adaptive tile / padding / slice path.
    B2 = 19
    x2 = jax.random.normal(k_x2, (B2, n_z), jnp.float32)
    out2 = jax.block_until_ready(small_cnn_forward(x2, params))
    assert out2.shape == (B2, N_CLASSES)
    assert jnp.allclose(out2, reference_forward_bf16(x2, params),
                        atol=5e-3, rtol=5e-3), "mismatch vs bf16 reference (ragged B)"

    print("KERNEL_OK")
</pallas_src>

<mosaic_0001>
module attributes {stable_mosaic.version = 11 : i64} {
  func.func @_mlp_kernel(%arg0: i32, %arg1: memref<16x32xbf16, #tpu.memory_space<vmem>>, %arg2: memref<32x512xbf16, #tpu.memory_space<vmem>>, %arg3: memref<1x512xf32, #tpu.memory_space<vmem>>, %arg4: memref<512x512xbf16, #tpu.memory_space<vmem>>, %arg5: memref<1x512xf32, #tpu.memory_space<vmem>>, %arg6: memref<512x512xbf16, #tpu.memory_space<vmem>>, %arg7: memref<1x512xf32, #tpu.memory_space<vmem>>, %arg8: memref<512x128xbf16, #tpu.memory_space<vmem>>, %arg9: memref<1x128xf32, #tpu.memory_space<vmem>>, %arg10: memref<16x128xbf16, #tpu.memory_space<vmem>>) attributes {dimension_semantics = [#tpu.dimension_semantics<parallel>], iteration_bounds = array<i64: 1>, scalar_prefetch = 0 : i64, scratch_operands = 0 : i64, tpu.core_type = #tpu.core_type<tc>, window_params = [{transform_indices = @transform_0, window_bounds = array<i64: 16, 32>}, {pipeline_mode = #tpu.pipeline_mode<synchronous>, transform_indices = @transform_1, window_bounds = array<i64: 32, 512>}, {pipeline_mode = #tpu.pipeline_mode<synchronous>, transform_indices = @transform_2, window_bounds = array<i64: 1, 512>}, {pipeline_mode = #tpu.pipeline_mode<synchronous>, transform_indices = @transform_3, window_bounds = array<i64: 512, 512>}, {pipeline_mode = #tpu.pipeline_mode<synchronous>, transform_indices = @transform_4, window_bounds = array<i64: 1, 512>}, {pipeline_mode = #tpu.pipeline_mode<synchronous>, transform_indices = @transform_5, window_bounds = array<i64: 512, 512>}, {pipeline_mode = #tpu.pipeline_mode<synchronous>, transform_indices = @transform_6, window_bounds = array<i64: 1, 512>}, {pipeline_mode = #tpu.pipeline_mode<synchronous>, transform_indices = @transform_7, window_bounds = array<i64: 512, 128>}, {pipeline_mode = #tpu.pipeline_mode<synchronous>, transform_indices = @transform_8, window_bounds = array<i64: 1, 128>}, {transform_indices = @transform_9, window_bounds = array<i64: 16, 128>}]} {
    %c0 = arith.constant 0 : index
    %c0_0 = arith.constant 0 : index
    %0 = vector.load %arg1[%c0, %c0_0] : memref<16x32xbf16, #tpu.memory_space<vmem>>, vector<16x32xbf16>
    %c0_1 = arith.constant 0 : index
    %c0_2 = arith.constant 0 : index
    %1 = vector.load %arg2[%c0_1, %c0_2] : memref<32x512xbf16, #tpu.memory_space<vmem>>, vector<32x512xbf16>
    %cst = arith.constant dense<0.000000e+00> : vector<16x512xf32>
    %2 = tpu.matmul %0, %1, %cst {dimension_numbers = #tpu.dot_dimension_numbers<[1], [0], [0], [1], [0, 0, 1, 1], [], []>} : vector<16x32xbf16>, vector<32x512xbf16>, vector<16x512xf32> -> vector<16x512xf32>
    %c0_3 = arith.constant 0 : index
    %c0_4 = arith.constant 0 : index
    %3 = vector.load %arg3[%c0_3, %c0_4] : memref<1x512xf32, #tpu.memory_space<vmem>>, vector<1x512xf32>
    %4 = vector.broadcast %3 : vector<1x512xf32> to vector<16x512xf32>
    %5 = arith.addf %2, %4 : vector<16x512xf32>
    %6 = arith.truncf %5 : vector<16x512xf32> to vector<16x512xbf16>
    %c0_5 = arith.constant 0 : index
    %c0_6 = arith.constant 0 : index
    %7 = vector.load %arg4[%c0_5, %c0_6] : memref<512x512xbf16, #tpu.memory_space<vmem>>, vector<512x512xbf16>
    %cst_7 = arith.constant dense<0.000000e+00> : vector<16x512xf32>
    %8 = tpu.matmul %6, %7, %cst_7 {dimension_numbers = #tpu.dot_dimension_numbers<[1], [0], [0], [1], [0, 0, 1, 1], [], []>} : vector<16x512xbf16>, vector<512x512xbf16>, vector<16x512xf32> -> vector<16x512xf32>
    %c0_8 = arith.constant 0 : index
    %c0_9 = arith.constant 0 : index
    %9 = vector.load %arg5[%c0_8, %c0_9] : memref<1x512xf32, #tpu.memory_space<vmem>>, vector<1x512xf32>
    %10 = vector.broadcast %9 : vector<1x512xf32> to vector<16x512xf32>
    %11 = arith.addf %8, %10 : vector<16x512xf32>
    %cst_10 = arith.constant 0.000000e+00 : f32
    %12 = vector.broadcast %cst_10 : f32 to vector<16x512xf32>
    %13 = arith.maximumf %11, %12 : vector<16x512xf32>
    %14 = arith.truncf %13 : vector<16x512xf32> to vector<16x512xbf16>
    %c0_11 = arith.constant 0 : index
    %c0_12 = arith.constant 0 : index
    %15 = vector.load %arg6[%c0_11, %c0_12] : memref<512x512xbf16, #tpu.memory_space<vmem>>, vector<512x512xbf16>
    %cst_13 = arith.constant dense<0.000000e+00> : vector<16x512xf32>
    %16 = tpu.matmul %14, %15, %cst_13 {dimension_numbers = #tpu.dot_dimension_numbers<[1], [0], [0], [1], [0, 0, 1, 1], [], []>} : vector<16x512xbf16>, vector<512x512xbf16>, vector<16x512xf32> -> vector<16x512xf32>
    %c0_14 = arith.constant 0 : index
    %c0_15 = arith.constant 0 : index
    %17 = vector.load %arg7[%c0_14, %c0_15] : memref<1x512xf32, #tpu.memory_space<vmem>>, vector<1x512xf32>
    %18 = vector.broadcast %17 : vector<1x512xf32> to vector<16x512xf32>
    %19 = arith.addf %16, %18 : vector<16x512xf32>
    %cst_16 = arith.constant 0.000000e+00 : f32
    %20 = vector.broadcast %cst_16 : f32 to vector<16x512xf32>
    %21 = arith.maximumf %19, %20 : vector<16x512xf32>
    %22 = arith.truncf %21 : vector<16x512xf32> to vector<16x512xbf16>
    %c0_17 = arith.constant 0 : index
    %c0_18 = arith.constant 0 : index
    %23 = vector.load %arg8[%c0_17, %c0_18] : memref<512x128xbf16, #tpu.memory_space<vmem>>, vector<512x128xbf16>
    %cst_19 = arith.constant dense<0.000000e+00> : vector<16x128xf32>
    %24 = tpu.matmul %22, %23, %cst_19 {dimension_numbers = #tpu.dot_dimension_numbers<[1], [0], [0], [1], [0, 0, 1, 1], [], []>} : vector<16x512xbf16>, vector<512x128xbf16>, vector<16x128xf32> -> vector<16x128xf32>
    %c0_20 = arith.constant 0 : index
    %c0_21 = arith.constant 0 : index
    %25 = vector.load %arg9[%c0_20, %c0_21] : memref<1x128xf32, #tpu.memory_space<vmem>>, vector<1x128xf32>
    %26 = vector.broadcast %25 : vector<1x128xf32> to vector<16x128xf32>
    %27 = arith.addf %24, %26 : vector<16x128xf32>
    %28 = arith.truncf %27 : vector<16x128xf32> to vector<16x128xbf16>
    %c0_22 = arith.constant 0 : index
    %c0_23 = arith.constant 0 : index
    %29 = vector.load %arg10[%c0_22, %c0_23] : memref<16x128xbf16, #tpu.memory_space<vmem>>, vector<16x128xbf16>
    tpu.vector_store %arg10[%c0_22, %c0_23], %28 {strides = array<i32>} : memref<16x128xbf16, #tpu.memory_space<vmem>>, vector<16x128xbf16>,
    return
  }
  func.func @transform_0(%arg0: i32) -> (i32, i32) {
    %c0_i32 = arith.constant 0 : i32
    %c0_i32_0 = arith.constant 0 : i32
    return %arg0, %c0_i32 : i32, i32
  }
  func.func @transform_1(%arg0: i32) -> (i32, i32) {
    %c0_i32 = arith.constant 0 : i32
    %c0_i32_0 = arith.constant 0 : i32
    %c0_i32_1 = arith.constant 0 : i32
    return %c0_i32, %c0_i32_0 : i32, i32
  }
  func.func @transform_2(%arg0: i32) -> (i32, i32) {
    %c0_i32 = arith.constant 0 : i32
    %c0_i32_0 = arith.constant 0 : i32
    %c0_i32_1 = arith.constant 0 : i32
    return %c0_i32, %c0_i32_0 : i32, i32
  }
  func.func @transform_3(%arg0: i32) -> (i32, i32) {
    %c0_i32 = arith.constant 0 : i32
    %c0_i32_0 = arith.constant 0 : i32
    %c0_i32_1 = arith.constant 0 : i32
    return %c0_i32, %c0_i32_0 : i32, i32
  }
  func.func @transform_4(%arg0: i32) -> (i32, i32) {
    %c0_i32 = arith.constant 0 : i32
    %c0_i32_0 = arith.constant 0 : i32
    %c0_i32_1 = arith.constant 0 : i32
    return %c0_i32, %c0_i32_0 : i32, i32
  }
  func.func @transform_5(%arg0: i32) -> (i32, i32) {
    %c0_i32 = arith.constant 0 : i32
    %c0_i32_0 = arith.constant 0 : i32
    %c0_i32_1 = arith.constant 0 : i32
    return %c0_i32, %c0_i32_0 : i32, i32
  }
  func.func @transform_6(%arg0: i32) -> (i32, i32) {
    %c0_i32 = arith.constant 0 : i32
    %c0_i32_0 = arith.constant 0 : i32
    %c0_i32_1 = arith.constant 0 : i32
    return %c0_i32, %c0_i32_0 : i32, i32
  }
  func.func @transform_7(%arg0: i32) -> (i32, i32) {
    %c0_i32 = arith.constant 0 : i32
    %c0_i32_0 = arith.constant 0 : i32
    %c0_i32_1 = arith.constant 0 : i32
    return %c0_i32, %c0_i32_0 : i32, i32
  }
  func.func @transform_8(%arg0: i32) -> (i32, i32) {
    %c0_i32 = arith.constant 0 : i32
    %c0_i32_0 = arith.constant 0 : i32
    %c0_i32_1 = arith.constant 0 : i32
    return %c0_i32, %c0_i32_0 : i32, i32
  }
  func.func @transform_9(%arg0: i32) -> (i32, i32) {
    %c0_i32 = arith.constant 0 : i32
    %c0_i32_0 = arith.constant 0 : i32
    return %arg0, %c0_i32 : i32, i32
  }
}

</mosaic_0001>

<llo_original>
// kernel: tpu_custom_call.1
$region0: #{tpu_custom_call.1}
  #allocation0 [shape = 'u32[]', space=smem, size = 0x4, offset = 0x4, fixed_abs, tag = 'smem constant byte address 0x4 - core index']
  #allocation1 [shape = 'u32[144,128]{1,0:T(1,128)}', space=vmem, size = 0x12000, scoped, tag = 'internal scratch']
  %s0 = inlined_call_operand.hbm [shape: bf16[16,32], index: 0, kind: input, shape index: {}]
  %s1 = inlined_call_operand.hbm [shape: bf16[32,512], index: 1, kind: input, shape index: {}]
  %s2 = inlined_call_operand.hbm [shape: f32[1,512], index: 2, kind: input, shape index: {}]
  %s3 = inlined_call_operand.hbm [shape: bf16[512,512], index: 3, kind: input, shape index: {}]
  %s4 = inlined_call_operand.vmem [shape: f32[1,512], index: 4, kind: input, shape index: {}]
  %s5 = inlined_call_operand.hbm [shape: bf16[512,512], index: 5, kind: input, shape index: {}]
  %s6 = inlined_call_operand.vmem [shape: f32[1,512], index: 6, kind: input, shape index: {}]
  %s7 = inlined_call_operand.hbm [shape: bf16[512,128], index: 7, kind: input, shape index: {}]
  %s8 = inlined_call_operand.vmem [shape: f32[1,128], index: 8, kind: input, shape index: {}]
  %s9 = inlined_call_operand.hbm [shape: bf16[16,128], index: 9, kind: output, shape index: {}]
  %s10 = sld [smem:[#allocation0]]
  $region70: #{tpu_custom_call.1} parent=0
    _
  %s12 = ssub.s32 1, %s10
  %s13 = scalar_select 0, %s12, %s10
  $region1: #{tpu_custom_call.1} parent=0
    #allocation2 [shape = 'u8[4096]{0}', space=vmem, size = 0x1000, scoped, tag = 'input window, operand 0, single buffered']
    #allocation3 [shape = 's32[1]{0}', space=sflag, size = 0x4, scoped, tag = 'scoped memory for tpu_custom_call.1']
    #allocation4 [shape = 's32[1]{0}', space=sflag, size = 0x4, scoped, tag = 'scoped memory for tpu_custom_call.1']
    #allocation5 [shape = 'u8[32768]{0}', space=vmem, size = 0x8000, scoped, tag = 'input window, operand 1, single buffered']
    #allocation6 [shape = 's32[1]{0}', space=sflag, size = 0x4, scoped, tag = 'scoped memory for tpu_custom_call.1']
    #allocation7 [shape = 'u8[2048]{0}', space=vmem, size = 0x800, scoped, tag = 'input window, operand 2, single buffered']
    #allocation8 [shape = 'u8[524288]{0}', space=vmem, size = 0x80000, scoped, tag = 'input window, operand 3, single buffered']
    #allocation9 [shape = 's32[1]{0}', space=sflag, size = 0x4, scoped, tag = 'scoped memory for tpu_custom_call.1']
    #allocation10 [shape = 'u8[524288]{0}', space=vmem, size = 0x80000, scoped, tag = 'input window, operand 5, single buffered']
    #allocation11 [shape = 'u8[131072]{0}', space=vmem, size = 0x20000, scoped, tag = 'input window, operand 7, single buffered']
    #allocation12 [shape = 's32[1]{0}', space=sflag, size = 0x4, scoped, tag = 'scoped memory for tpu_custom_call.1']
    #allocation13 [shape = 'u8[4096]{0}', space=vmem, size = 0x1000, scoped, tag = 'output window, operand 0, single buffered']
    %14 = vsyncpa [#allocation3], 0
    %15 = vsyncpa [#allocation6], 0
    %16 = vsyncpa [#allocation9], 0
    %17 = vsyncpa [#allocation12], 0
    %18 = vsyncpa [#allocation4], 0
    // Predicated region
    $region2: #{tpu_custom_call.1} parent=1 // pred_check
      _
    $region3: #{tpu_custom_call.1} parent=1 // pred_check_branch
      %20 = sbr.rel (0) target = $region5
    $region4: #{tpu_custom_call.1} parent=1 // pred_region
      %s22 = ssub.s32 128, 128
      %23 = vsyncadd [#allocation3], %s22
      %s24 = sshll.u32 [#allocation2], 4
      %s25 = int_to_ptr.vmem [resolvable:$true] %s24
      %30 = dma.hbm_to_vmem [thread:$0]  %s0, 128, %s25, [#allocation3], 64, 64, 4
    $region5: #{tpu_custom_call.1} parent=1 // pred_fallthru
      _
    // Predicated region
    $region6: #{tpu_custom_call.1} parent=1 // pred_check
      _
    $region7: #{tpu_custom_call.1} parent=1 // pred_check_branch
      %32 = sbr.rel (0) target = $region9
    $region8: #{tpu_custom_call.1} parent=1 // pred_region
      %s34 = ssub.s32 1024, 1024
      %35 = vsyncadd [#allocation6], %s34
      %s36 = sshll.u32 [#allocation5], 4
      %s37 = int_to_ptr.vmem [resolvable:$true] %s36
      %42 = dma.hbm_to_vmem [thread:$0]  %s1, 1024, %s37, [#allocation6], 256, 256, 16
    $region9: #{tpu_custom_call.1} parent=1 // pred_fallthru
      _
    // Predicated region
    $region10: #{tpu_custom_call.1} parent=1 // pred_check
      _
    $region11: #{tpu_custom_call.1} parent=1 // pred_check_branch
      %44 = sbr.rel (0) target = $region13
    $region12: #{tpu_custom_call.1} parent=1 // pred_region
      %s46 = ssub.s32 64, 64
      %47 = vsyncadd [#allocation6], %s46
      %s49 = sshll.u32 [#allocation7], 4
      %s50 = int_to_ptr.vmem [resolvable:$true] %s49
      %52 = dma.hbm_to_vmem [thread:$0]  %s2, 64, %s50, [#allocation6]
    $region13: #{tpu_custom_call.1} parent=1 // pred_fallthru
      _
    // Predicated region
    $region14: #{tpu_custom_call.1} parent=1 // pred_check
      _
    $region15: #{tpu_custom_call.1} parent=1 // pred_check_branch
      %54 = sbr.rel (0) target = $region17
    $region16: #{tpu_custom_call.1} parent=1 // pred_region
      %s56 = ssub.s32 16384, 16384
      %57 = vsyncadd [#allocation9], %s56
      %s58 = sshll.u32 [#allocation8], 4
      %s59 = int_to_ptr.vmem [resolvable:$true] %s58
      %64 = dma.hbm_to_vmem [thread:$0]  %s3, 16384, %s59, [#allocation9], 256, 256, 16
    $region17: #{tpu_custom_call.1} parent=1 // pred_fallthru
      _
    // Predicated region
    $region18: #{tpu_custom_call.1} parent=1 // pred_check
      _
    $region19: #{tpu_custom_call.1} parent=1 // pred_check_branch
      %66 = sbr.rel (0) target = $region21
    $region20: #{tpu_custom_call.1} parent=1 // pred_region
      _
    $region21: #{tpu_custom_call.1} parent=1 // pred_fallthru
      _
    // Predicated region
    $region22: #{tpu_custom_call.1} parent=1 // pred_check
      _
    $region23: #{tpu_custom_call.1} parent=1 // pred_check_branch
      %68 = sbr.rel (0) target = $region25
    $region24: #{tpu_custom_call.1} parent=1 // pred_region
      %s70 = ssub.s32 16384, 16384
      %71 = vsyncadd [#allocation9], %s70
      %s72 = sshll.u32 [#allocation10], 4
      %s73 = int_to_ptr.vmem [resolvable:$true] %s72
      %78 = dma.hbm_to_vmem [thread:$0]  %s5, 16384, %s73, [#allocation9], 256, 256, 16
    $region25: #{tpu_custom_call.1} parent=1 // pred_fallthru
      _
    // Predicated region
    $region26: #{tpu_custom_call.1} parent=1 // pred_check
      _
    $region27: #{tpu_custom_call.1} parent=1 // pred_check_branch
      %80 = sbr.rel (0) target = $region29
    $region28: #{tpu_custom_call.1} parent=1 // pred_region
      _
    $region29: #{tpu_custom_call.1} parent=1 // pred_fallthru
      _
    // Predicated region
    $region30: #{tpu_custom_call.1} parent=1 // pred_check
      _
    $region31: #{tpu_custom_call.1} parent=1 // pred_check_branch
      %82 = sbr.rel (0) target = $region33
    $region32: #{tpu_custom_call.1} parent=1 // pred_region
      %s84 = ssub.s32 4096, 4096
      %85 = vsyncadd [#allocation12], %s84
      %s86 = sshll.u32 [#allocation11], 4
      %s87 = int_to_ptr.vmem [resolvable:$true] %s86
      %92 = dma.hbm_to_vmem [thread:$0]  %s7, 4096, %s87, [#allocation12], 64, 64, 4
    $region33: #{tpu_custom_call.1} parent=1 // pred_fallthru
      _
    // Predicated region
    $region34: #{tpu_custom_call.1} parent=1 // pred_check
      _
    $region35: #{tpu_custom_call.1} parent=1 // pred_check_branch
      %94 = sbr.rel (0) target = $region37
    $region36: #{tpu_custom_call.1} parent=1 // pred_region
      _
    $region37: #{tpu_custom_call.1} parent=1 // pred_fallthru
      _
    // Predicated region
    $region38: #{tpu_custom_call.1} parent=1 // pred_check
      _
    $region39: #{tpu_custom_call.1} parent=1 // pred_check_branch
      %96 = sbr.rel (0) target = $region41
    $region40: #{tpu_custom_call.1} parent=1 // pred_region
      %97 = dma.done [#allocation3], 128
    $region41: #{tpu_custom_call.1} parent=1 // pred_fallthru
      _
    // Predicated region
    $region42: #{tpu_custom_call.1} parent=1 // pred_check
      _
    $region43: #{tpu_custom_call.1} parent=1 // pred_check_branch
      %99 = sbr.rel (0) target = $region45
    $region44: #{tpu_custom_call.1} parent=1 // pred_region
      %100 = dma.done [#allocation6], 1024
    $region45: #{tpu_custom_call.1} parent=1 // pred_fallthru
      _
    // Predicated region
    $region46: #{tpu_custom_call.1} parent=1 // pred_check
      _
    $region47: #{tpu_custom_call.1} parent=1 // pred_check_branch
      %102 = sbr.rel (0) target = $region49
    $region48: #{tpu_custom_call.1} parent=1 // pred_region
      %103 = dma.done [#allocation6], 64
    $region49: #{tpu_custom_call.1} parent=1 // pred_fallthru
      _
    // Predicated region
    $region50: #{tpu_custom_call.1} parent=1 // pred_check
      _
    $region51: #{tpu_custom_call.1} parent=1 // pred_check_branch
      %105 = sbr.rel (0) target = $region53
    $region52: #{tpu_custom_call.1} parent=1 // pred_region
      %106 = dma.done [#allocation9], 16384
    $region53: #{tpu_custom_call.1} parent=1 // pred_fallthru
      _
    // Predicated region
    $region54: #{tpu_custom_call.1} parent=1 // pred_check
      _
    $region55: #{tpu_custom_call.1} parent=1 // pred_check_branch
      %108 = sbr.rel (0) target = $region57
    $region56: #{tpu_custom_call.1} parent=1 // pred_region
      %109 = dma.done [#allocation9], 16384
    $region57: #{tpu_custom_call.1} parent=1 // pred_fallthru
      _
    // Predicated region
    $region58: #{tpu_custom_call.1} parent=1 // pred_check
      _
    $region59: #{tpu_custom_call.1} parent=1 // pred_check_branch
      %111 = sbr.rel (0) target = $region61
    $region60: #{tpu_custom_call.1} parent=1 // pred_region
      %112 = dma.done [#allocation12], 4096
    $region61: #{tpu_custom_call.1} parent=1 // pred_fallthru
      _
    %v114 = vld [vmem:[#allocation2] sm:$0xf]
    %v115 = vld [vmem:[#allocation2 + $0x4] sm:$0xf]
    %v116 = vld [vmem:[#allocation5] sm:$0xff]
    %v117 = vld [vmem:[#allocation5 + $0x8] sm:$0xff]
    %v118 = vld [vmem:[#allocation5 + $0x10] sm:$0xff]
    %v119 = vld [vmem:[#allocation5 + $0x18] sm:$0xff]
    %v120 = vld [vmem:[#allocation5 + $0x20] sm:$0xff]
    %v121 = vld [vmem:[#allocation5 + $0x28] sm:$0xff]
    %v122 = vld [vmem:[#allocation5 + $0x30] sm:$0xff]
    %v123 = vld [vmem:[#allocation5 + $0x38] sm:$0xff]
    %v124 = vld [vmem:[#allocation7] sm:$0xf]
    %v126 = vlaneseq
    %v127 = vshrl.u32 %v126, 7
    %v128 = vsub.s32 0, %v127
    %v129 = vrot.slane %v124, %v128
    %v130 = vlaneseq
    %v131 = vshrl.u32 %v130, 7
    %v132 = vsub.s32 1, %v131
    %v133 = vrot.slane %v124, %v132
    %v134 = vlaneseq
    %v135 = vshrl.u32 %v134, 7
    %v136 = vsub.s32 2, %v135
    %v137 = vrot.slane %v124, %v136
    %v138 = vlaneseq
    %v139 = vshrl.u32 %v138, 7
    %v140 = vsub.s32 3, %v139
    %v141 = vrot.slane %v124, %v140
    %v148 = vunpack.c.l.b16 %v114
    %v149 = vunpack.c.l.b16 %v115
    %v150 = vpack.c.b16 %v149, %v148
    %v159 = vunpack.c.l.b16 %v116
    %v160 = vunpack.c.h.b16 %v116
    %v161 = vunpack.c.l.b16 %v117
    %v162 = vunpack.c.h.b16 %v117
    %v163 = vunpack.c.l.b16 %v118
    %v164 = vunpack.c.h.b16 %v118
    %v165 = vunpack.c.l.b16 %v119
    %v166 = vunpack.c.h.b16 %v119
    %v167 = vunpack.c.l.b16 %v120
    %v168 = vunpack.c.h.b16 %v120
    %v169 = vunpack.c.l.b16 %v121
    %v170 = vunpack.c.h.b16 %v121
    %v171 = vunpack.c.l.b16 %v122
    %v172 = vunpack.c.h.b16 %v122
    %v173 = vunpack.c.l.b16 %v123
    %v174 = vunpack.c.h.b16 %v123
    %v175 = vpack.c.b16 %v163, %v159
    %v176 = vpack.c.b16 %v164, %v160
    %v177 = vpack.c.b16 %v165, %v161
    %v178 = vpack.c.b16 %v166, %v162
    %v179 = vpack.c.b16 %v171, %v167
    %v180 = vpack.c.b16 %v172, %v168
    %v181 = vpack.c.b16 %v173, %v169
    %v182 = vpack.c.b16 %v174, %v170
    %vm191 = vcmask 261120
    %v193 = vsel %vm191, %v150, 0
    %195 = vmatprep.subr.bf16.mxu0 0
    %196 = vmatpush1.bf16.msra.mxu0 0
    %197 = vmatprep.subr.bf16.mxu0 0
    %198 = vmatpush1.bf16.msra.mxu0 0
    %199 = vmatprep.subr.bf16.mxu0 0
    %200 = vmatpush1.bf16.msra.mxu0 0
    %201 = vmatprep.subr.bf16.mxu0 0
    %202 = vmatpush1.bf16.msra.mxu0 0
    %203 = vmatprep.subr.bf16.mxu0 0
    %204 = vmatpush1.bf16.msra.mxu0 0
    %205 = vmatprep.subr.bf16.mxu0 0
    %206 = vmatpush1.bf16.msra.mxu0 0
    %207 = vmatprep.subr.bf16.mxu0 %v180
    %208 = vmatpush1.bf16.msra.mxu0 %v179
    %209 = vmatprep.subr.bf16.mxu0 %v176
    %210 = vmatpush1.bf16.msra.mxu0 %v175
    %211 = vmatprep.subr.bf16.mxu0 0
    %212 = vmatpush2.bf16.msra.mxu0 0
    %213 = vmatprep.subr.bf16.mxu0 0
    %214 = vmatpush2.bf16.msra.mxu0 0
    %215 = vmatprep.subr.bf16.mxu0 0
    %216 = vmatpush2.bf16.msra.mxu0 0
    %217 = vmatprep.subr.bf16.mxu0 0
    %218 = vmatpush2.bf16.msra.mxu0 0
    %219 = vmatprep.subr.bf16.mxu0 0
    %220 = vmatpush2.bf16.msra.mxu0 0
    %221 = vmatprep.subr.bf16.mxu0 0
    %222 = vmatpush2.bf16.msra.mxu0 0
    %223 = vmatprep.subr.bf16.mxu0 0
    %224 = vmatpush2.bf16.msra.mxu0 0
    %225 = vmatprep.subr.bf16.mxu0 0
    %226 = vmatpush2.bf16.msra.mxu0 0
    %227 = vmatprep.mubr.bf16.mxu0 0
    %228 = vmatmul.mubr.bf16.gmra.mxu0 %v193
    %v229 = vpop.f32.mrf.mxu0
    %v230 = vadd.f32 %v129, %v229
    %v231 = vpop.f32.mrf.mxu0
    %v232 = vadd.f32 %v133, %v231
    %v233 = vpop.f32.mrf.mxu0
    %v234 = vadd.f32 %v129, %v233
    %v235 = vpop.f32.mrf.mxu0
    %v236 = vadd.f32 %v133, %v235
    %237 = vdwg.mxu0
    %238 = vmatprep.subr.bf16.mxu0 0
    %239 = vmatpush1.bf16.msra.mxu0 0
    %240 = vmatprep.subr.bf16.mxu0 0
    %241 = vmatpush1.bf16.msra.mxu0 0
    %242 = vmatprep.subr.bf16.mxu0 0
    %243 = vmatpush1.bf16.msra.mxu0 0
    %244 = vmatprep.subr.bf16.mxu0 0
    %245 = vmatpush1.bf16.msra.mxu0 0
    %246 = vmatprep.subr.bf16.mxu0 0
    %247 = vmatpush1.bf16.msra.mxu0 0
    %248 = vmatprep.subr.bf16.mxu0 0
    %249 = vmatpush1.bf16.msra.mxu0 0
    %250 = vmatprep.subr.bf16.mxu0 %v182
    %251 = vmatpush1.bf16.msra.mxu0 %v181
    %252 = vmatprep.subr.bf16.mxu0 %v178
    %253 = vmatpush1.bf16.msra.mxu0 %v177
    %254 = vmatprep.subr.bf16.mxu0 0
    %255 = vmatpush2.bf16.msra.mxu0 0
    %256 = vmatprep.subr.bf16.mxu0 0
    %257 = vmatpush2.bf16.msra.mxu0 0
    %258 = vmatprep.subr.bf16.mxu0 0
    %259 = vmatpush2.bf16.msra.mxu0 0
    %260 = vmatprep.subr.bf16.mxu0 0
    %261 = vmatpush2.bf16.msra.mxu0 0
    %262 = vmatprep.subr.bf16.mxu0 0
    %263 = vmatpush2.bf16.msra.mxu0 0
    %264 = vmatprep.subr.bf16.mxu0 0
    %265 = vmatpush2.bf16.msra.mxu0 0
    %266 = vmatprep.subr.bf16.mxu0 0
    %267 = vmatpush2.bf16.msra.mxu0 0
    %268 = vmatprep.subr.bf16.mxu0 0
    %269 = vmatpush2.bf16.msra.mxu0 0
    %270 = vmatprep.mubr.bf16.mxu0 0
    %271 = vmatmul.mubr.bf16.gmra.mxu0 %v193
    %v272 = vpop.f32.mrf.mxu0
    %v273 = vadd.f32 %v137, %v272
    %v274 = vpop.f32.mrf.mxu0
    %v275 = vadd.f32 %v141, %v274
    %v276 = vpop.f32.mrf.mxu0
    %v277 = vadd.f32 %v137, %v276
    %v278 = vpop.f32.mrf.mxu0
    %v279 = vadd.f32 %v141, %v278
    %280 = vdwg.mxu0
    %v281 = vpack.c.bf16 %v234, %v230
    %v282 = vpack.c.bf16 %v236, %v232
    %v283 = vpack.c.bf16 %v277, %v273
    %v284 = vpack.c.bf16 %v279, %v275
    %v285 = vld [vmem:[#allocation8] sm:$0xff]
    %v286 = vld [vmem:[#allocation8 + $0x8] sm:$0xff]
    %v287 = vld [vmem:[#allocation8 + $0x10] sm:$0xff]
    %v288 = vld [vmem:[#allocation8 + $0x18] sm:$0xff]
    %v289 = vld [vmem:[#allocation8 + $0x20] sm:$0xff]
    %v290 = vld [vmem:[#allocation8 + $0x28] sm:$0xff]
    %v291 = vld [vmem:[#allocation8 + $0x30] sm:$0xff]
    %v292 = vld [vmem:[#allocation8 + $0x38] sm:$0xff]
    %v293 = vld [vmem:[#allocation8 + $0x40] sm:$0xff]
    %v294 = vld [vmem:[#allocation8 + $0x48] sm:$0xff]
    %v295 = vld [vmem:[#allocation8 + $0x50] sm:$0xff]
    %v296 = vld [vmem:[#allocation8 + $0x58] sm:$0xff]
    %v297 = vld [vmem:[#allocation8 + $0x60] sm:$0xff]
    %v298 = vld [vmem:[#allocation8 + $0x68] sm:$0xff]
    %v299 = vld [vmem:[#allocation8 + $0x70] sm:$0xff]
    %v300 = vld [vmem:[#allocation8 + $0x78] sm:$0xff]
    %v301 = vld [vmem:[#allocation8 + $0x80] sm:$0xff]
    %v302 = vld [vmem:[#allocation8 + $0x88] sm:$0xff]
    %v303 = vld [vmem:[#allocation8 + $0x90] sm:$0xff]
    %v304 = vld [vmem:[#allocation8 + $0x98] sm:$0xff]
    %v305 = vld [vmem:[#allocation8 + $0xa0] sm:$0xff]
    %v306 = vld [vmem:[#allocation8 + $0xa8] sm:$0xff]
    %v307 = vld [vmem:[#allocation8 + $0xb0] sm:$0xff]
    %v308 = vld [vmem:[#allocation8 + $0xb8] sm:$0xff]
    %v309 = vld [vmem:[#allocation8 + $0xc0] sm:$0xff]
    %v310 = vld [vmem:[#allocation8 + $0xc8] sm:$0xff]
    %v311 = vld [vmem:[#allocation8 + $0xd0] sm:$0xff]
    %v312 = vld [vmem:[#allocation8 + $0xd8] sm:$0xff]
    %v313 = vld [vmem:[#allocation8 + $0xe0] sm:$0xff]
    %v314 = vld [vmem:[#allocation8 + $0xe8] sm:$0xff]
    %v315 = vld [vmem:[#allocation8 + $0xf0] sm:$0xff]
    %v316 = vld [vmem:[#allocation8 + $0xf8] sm:$0xff]
    %v317 = vld [vmem:[#allocation8 + $0x100] sm:$0xff]
    %v318 = vld [vmem:[#allocation8 + $0x108] sm:$0xff]
    %v319 = vld [vmem:[#allocation8 + $0x110] sm:$0xff]
    %v320 = vld [vmem:[#allocation8 + $0x118] sm:$0xff]
    %v321 = vld [vmem:[#allocation8 + $0x120] sm:$0xff]
    %v322 = vld [vmem:[#allocation8 + $0x128] sm:$0xff]
    %v323 = vld [vmem:[#allocation8 + $0x130] sm:$0xff]
    %v324 = vld [vmem:[#allocation8 + $0x138] sm:$0xff]
    %v325 = vld [vmem:[#allocation8 + $0x140] sm:$0xff]
    %v326 = vld [vmem:[#allocation8 + $0x148] sm:$0xff]
    %v327 = vld [vmem:[#allocation8 + $0x150] sm:$0xff]
    %v328 = vld [vmem:[#allocation8 + $0x158] sm:$0xff]
    %v329 = vld [vmem:[#allocation8 + $0x160] sm:$0xff]
    %v330 = vld [vmem:[#allocation8 + $0x168] sm:$0xff]
    %v331 = vld [vmem:[#allocation8 + $0x170] sm:$0xff]
    %v332 = vld [vmem:[#allocation8 + $0x178] sm:$0xff]
    %v333 = vld [vmem:[#allocation8 + $0x180] sm:$0xff]
    %v334 = vld [vmem:[#allocation8 + $0x188] sm:$0xff]
    %v335 = vld [vmem:[#allocation8 + $0x190] sm:$0xff]
    %v336 = vld [vmem:[#allocation8 + $0x198] sm:$0xff]
    %v337 = vld [vmem:[#allocation8 + $0x1a0] sm:$0xff]
    %v338 = vld [vmem:[#allocation8 + $0x1a8] sm:$0xff]
    %v339 = vld [vmem:[#allocation8 + $0x1b0] sm:$0xff]
    %v340 = vld [vmem:[#allocation8 + $0x1b8] sm:$0xff]
    %v341 = vld [vmem:[#allocation8 + $0x1c0] sm:$0xff]
    %v342 = vld [vmem:[#allocation8 + $0x1c8] sm:$0xff]
    %v343 = vld [vmem:[#allocation8 + $0x1d0] sm:$0xff]
    %v344 = vld [vmem:[#allocation8 + $0x1d8] sm:$0xff]
    %v345 = vld [vmem:[#allocation8 + $0x1e0] sm:$0xff]
    %v346 = vld [vmem:[#allocation8 + $0x1e8] sm:$0xff]
    %v347 = vld [vmem:[#allocation8 + $0x1f0] sm:$0xff]
    %v348 = vld [vmem:[#allocation8 + $0x1f8] sm:$0xff]
    %v349 = vld [vmem:[#allocation8 + $0x200] sm:$0xff]
    %v350 = vld [vmem:[#allocation8 + $0x208] sm:$0xff]
    %v351 = vld [vmem:[#allocation8 + $0x210] sm:$0xff]
    %v352 = vld [vmem:[#allocation8 + $0x218] sm:$0xff]
    %v353 = vld [vmem:[#allocation8 + $0x220] sm:$0xff]
    %v354 = vld [vmem:[#allocation8 + $0x228] sm:$0xff]
    %v355 = vld [vmem:[#allocation8 + $0x230] sm:$0xff]
    %v356 = vld [vmem:[#allocation8 + $0x238] sm:$0xff]
    %v357 = vld [vmem:[#allocation8 + $0x240] sm:$0xff]
    %v358 = vld [vmem:[#allocation8 + $0x248] sm:$0xff]
    %v359 = vld [vmem:[#allocation8 + $0x250] sm:$0xff]
    %v360 = vld [vmem:[#allocation8 + $0x258] sm:$0xff]
    %v361 = vld [vmem:[#allocation8 + $0x260] sm:$0xff]
    %v362 = vld [vmem:[#allocation8 + $0x268] sm:$0xff]
    %v363 = vld [vmem:[#allocation8 + $0x270] sm:$0xff]
    %v364 = vld [vmem:[#allocation8 + $0x278] sm:$0xff]
    %v365 = vld [vmem:[#allocation8 + $0x280] sm:$0xff]
    %v366 = vld [vmem:[#allocation8 + $0x288] sm:$0xff]
    %v367 = vld [vmem:[#allocation8 + $0x290] sm:$0xff]
    %v368 = vld [vmem:[#allocation8 + $0x298] sm:$0xff]
    %v369 = vld [vmem:[#allocation8 + $0x2a0] sm:$0xff]
    %v370 = vld [vmem:[#allocation8 + $0x2a8] sm:$0xff]
    %v371 = vld [vmem:[#allocation8 + $0x2b0] sm:$0xff]
    %v372 = vld [vmem:[#allocation8 + $0x2b8] sm:$0xff]
    %v373 = vld [vmem:[#allocation8 + $0x2c0] sm:$0xff]
    %v374 = vld [vmem:[#allocation8 + $0x2c8] sm:$0xff]
    %v375 = vld [vmem:[#allocation8 + $0x2d0] sm:$0xff]
    %v376 = vld [vmem:[#allocation8 + $0x2d8] sm:$0xff]
    %v377 = vld [vmem:[#allocation8 + $0x2e0] sm:$0xff]
    %v378 = vld [vmem:[#allocation8 + $0x2e8] sm:$0xff]
    %v379 = vld [vmem:[#allocation8 + $0x2f0] sm:$0xff]
    %v380 = vld [vmem:[#allocation8 + $0x2f8] sm:$0xff]
    %v381 = vld [vmem:[#allocation8 + $0x300] sm:$0xff]
    %v382 = vld [vmem:[#allocation8 + $0x308] sm:$0xff]
    %v383 = vld [vmem:[#allocation8 + $0x310] sm:$0xff]
    %v384 = vld [vmem:[#allocation8 + $0x318] sm:$0xff]
    %v385 = vld [vmem:[#allocation8 + $0x320] sm:$0xff]
    %v386 = vld [vmem:[#allocation8 + $0x328] sm:$0xff]
    %v387 = vld [vmem:[#allocation8 + $0x330] sm:$0xff]
    %v388 = vld [vmem:[#allocation8 + $0x338] sm:$0xff]
    %v389 = vld [vmem:[#allocation8 + $0x340] sm:$0xff]
    %v390 = vld [vmem:[#allocation8 + $0x348] sm:$0xff]
    %v391 = vld [vmem:[#allocation8 + $0x350] sm:$0xff]
    %v392 = vld [vmem:[#allocation8 + $0x358] sm:$0xff]
    %v393 = vld [vmem:[#allocation8 + $0x360] sm:$0xff]
    %v394 = vld [vmem:[#allocation8 + $0x368] sm:$0xff]
    %v395 = vld [vmem:[#allocation8 + $0x370] sm:$0xff]
    %v396 = vld [vmem:[#allocation8 + $0x378] sm:$0xff]
    %v397 = vld [vmem:[#allocation8 + $0x380] sm:$0xff]
    %v398 = vld [vmem:[#allocation8 + $0x388] sm:$0xff]
    %v399 = vld [vmem:[#allocation8 + $0x390] sm:$0xff]
    %v400 = vld [vmem:[#allocation8 + $0x398] sm:$0xff]
    %v401 = vld [vmem:[#allocation8 + $0x3a0] sm:$0xff]
    %v402 = vld [vmem:[#allocation8 + $0x3a8] sm:$0xff]
    %v403 = vld [vmem:[#allocation8 + $0x3b0] sm:$0xff]
    %v404 = vld [vmem:[#allocation8 + $0x3b8] sm:$0xff]
    %v405 = vld [vmem:[#allocation8 + $0x3c0] sm:$0xff]
    %v406 = vld [vmem:[#allocation8 + $0x3c8] sm:$0xff]
    %v407 = vld [vmem:[#allocation8 + $0x3d0] sm:$0xff]
    %v408 = vld [vmem:[#allocation8 + $0x3d8] sm:$0xff]
    %v409 = vld [vmem:[#allocation8 + $0x3e0] sm:$0xff]
    %v410 = vld [vmem:[#allocation8 + $0x3e8] sm:$0xff]
    %v411 = vld [vmem:[#allocation8 + $0x3f0] sm:$0xff]
    %v412 = vld [vmem:[#allocation8 + $0x3f8] sm:$0xff]
    %v413 = vld [vmem:[%s4] sm:$0xf]
    %v415 = vlaneseq
    %v416 = vshrl.u32 %v415, 7
    %v417 = vsub.s32 0, %v416
    %v418 = vrot.slane %v413, %v417
    %v419 = vlaneseq
    %v420 = vshrl.u32 %v419, 7
    %v421 = vsub.s32 1, %v420
    %v422 = vrot.slane %v413, %v421
    %v423 = vlaneseq
    %v424 = vshrl.u32 %v423, 7
    %v425 = vsub.s32 2, %v424
    %v426 = vrot.slane %v413, %v425
    %v427 = vlaneseq
    %v428 = vshrl.u32 %v427, 7
    %v429 = vsub.s32 3, %v428
    %v430 = vrot.slane %v413, %v429
    %v563 = vunpack.c.l.b16 %v285
    %v564 = vunpack.c.h.b16 %v285
    %v565 = vunpack.c.l.b16 %v286
    %v566 = vunpack.c.h.b16 %v286
    %v567 = vunpack.c.l.b16 %v287
    %v568 = vunpack.c.h.b16 %v287
    %v569 = vunpack.c.l.b16 %v288
    %v570 = vunpack.c.h.b16 %v288
    %v571 = vunpack.c.l.b16 %v289
    %v572 = vunpack.c.h.b16 %v289
    %v573 = vunpack.c.l.b16 %v290
    %v574 = vunpack.c.h.b16 %v290
    %v575 = vunpack.c.l.b16 %v291
    %v576 = vunpack.c.h.b16 %v291
    %v577 = vunpack.c.l.b16 %v292
    %v578 = vunpack.c.h.b16 %v292
    %v579 = vunpack.c.l.b16 %v293
    %v580 = vunpack.c.h.b16 %v293
    %v581 = vunpack.c.l.b16 %v294
    %v582 = vunpack.c.h.b16 %v294
    %v583 = vunpack.c.l.b16 %v295
    %v584 = vunpack.c.h.b16 %v295
    %v585 = vunpack.c.l.b16 %v296
    %v586 = vunpack.c.h.b16 %v296
    %v587 = vunpack.c.l.b16 %v297
    %v588 = vunpack.c.h.b16 %v297
    %v589 = vunpack.c.l.b16 %v298
    %v590 = vunpack.c.h.b16 %v298
    %v591 = vunpack.c.l.b16 %v299
    %v592 = vunpack.c.h.b16 %v299
    %v593 = vunpack.c.l.b16 %v300
    %v594 = vunpack.c.h.b16 %v300
    %v595 = vunpack.c.l.b16 %v301
    %v596 = vunpack.c.h.b16 %v301
    %v597 = vunpack.c.l.b16 %v302
    %v598 = vunpack.c.h.b16 %v302
    %v599 = vunpack.c.l.b16 %v303
    %v600 = vunpack.c.h.b16 %v303
    %v601 = vunpack.c.l.b16 %v304
    %v602 = vunpack.c.h.b16 %v304
    %v603 = vunpack.c.l.b16 %v305
    %v604 = vunpack.c.h.b16 %v305
    %v605 = vunpack.c.l.b16 %v306
    %v606 = vunpack.c.h.b16 %v306
    %v607 = vunpack.c.l.b16 %v307
    %v608 = vunpack.c.h.b16 %v307
    %v609 = vunpack.c.l.b16 %v308
    %v610 = vunpack.c.h.b16 %v308
    %v611 = vunpack.c.l.b16 %v309
    %v612 = vunpack.c.h.b16 %v309
    %v613 = vunpack.c.l.b16 %v310
    %v614 = vunpack.c.h.b16 %v310
    %v615 = vunpack.c.l.b16 %v311
    %v616 = vunpack.c.h.b16 %v311
    %v617 = vunpack.c.l.b16 %v312
    %v618 = vunpack.c.h.b16 %v312
    %v619 = vunpack.c.l.b16 %v313
    %v620 = vunpack.c.h.b16 %v313
    %v621 = vunpack.c.l.b16 %v314
    %v622 = vunpack.c.h.b16 %v314
    %v623 = vunpack.c.l.b16 %v315
    %v624 = vunpack.c.h.b16 %v315
    %v625 = vunpack.c.l.b16 %v316
    %v626 = vunpack.c.h.b16 %v316
    %v627 = vunpack.c.l.b16 %v317
    %v628 = vunpack.c.h.b16 %v317
    %v629 = vunpack.c.l.b16 %v318
    %v630 = vunpack.c.h.b16 %v318
    %v631 = vunpack.c.l.b16 %v319
    %v632 = vunpack.c.h.b16 %v319
    %v633 = vunpack.c.l.b16 %v320
    %v634 = vunpack.c.h.b16 %v320
    %v635 = vunpack.c.l.b16 %v321
    %v636 = vunpack.c.h.b16 %v321
    %v637 = vunpack.c.l.b16 %v322
    %v638 = vunpack.c.h.b16 %v322
    %v639 = vunpack.c.l.b16 %v323
    %v640 = vunpack.c.h.b16 %v323
    %v641 = vunpack.c.l.b16 %v324
    %v642 = vunpack.c.h.b16 %v324
    %v643 = vunpack.c.l.b16 %v325
    %v644 = vunpack.c.h.b16 %v325
    %v645 = vunpack.c.l.b16 %v326
    %v646 = vunpack.c.h.b16 %v326
    %v647 = vunpack.c.l.b16 %v327
    %v648 = vunpack.c.h.b16 %v327
    %v649 = vunpack.c.l.b16 %v328
    %v650 = vunpack.c.h.b16 %v328
    %v651 = vunpack.c.l.b16 %v329
    %v652 = vunpack.c.h.b16 %v329
    %v653 = vunpack.c.l.b16 %v330
    %v654 = vunpack.c.h.b16 %v330
    %v655 = vunpack.c.l.b16 %v331
    %v656 = vunpack.c.h.b16 %v331
    %v657 = vunpack.c.l.b16 %v332
    %v658 = vunpack.c.h.b16 %v332
    %v659 = vunpack.c.l.b16 %v333
    %v660 = vunpack.c.h.b16 %v333
    %v661 = vunpack.c.l.b16 %v334
    %v662 = vunpack.c.h.b16 %v334
    %v663 = vunpack.c.l.b16 %v335
    %v664 = vunpack.c.h.b16 %v335
    %v665 = vunpack.c.l.b16 %v336
    %v666 = vunpack.c.h.b16 %v336
    %v667 = vunpack.c.l.b16 %v337
    %v668 = vunpack.c.h.b16 %v337
    %v669 = vunpack.c.l.b16 %v338
    %v670 = vunpack.c.h.b16 %v338
    %v671 = vunpack.c.l.b16 %v339
    %v672 = vunpack.c.h.b16 %v339
    %v673 = vunpack.c.l.b16 %v340
    %v674 = vunpack.c.h.b16 %v340
    %v675 = vunpack.c.l.b16 %v341
    %v676 = vunpack.c.h.b16 %v341
    %v677 = vunpack.c.l.b16 %v342
    %v678 = vunpack.c.h.b16 %v342
    %v679 = vunpack.c.l.b16 %v343
    %v680 = vunpack.c.h.b16 %v343
    %v681 = vunpack.c.l.b16 %v344
    %v682 = vunpack.c.h.b16 %v344
    %v683 = vunpack.c.l.b16 %v345
    %v684 = vunpack.c.h.b16 %v345
    %v685 = vunpack.c.l.b16 %v346
    %v686 = vunpack.c.h.b16 %v346
    %v687 = vunpack.c.l.b16 %v347
    %v688 = vunpack.c.h.b16 %v347
    %v689 = vunpack.c.l.b16 %v348
    %v690 = vunpack.c.h.b16 %v348
    %v691 = vunpack.c.l.b16 %v349
    %v692 = vunpack.c.h.b16 %v349
    %v693 = vunpack.c.l.b16 %v350
    %v694 = vunpack.c.h.b16 %v350
    %v695 = vunpack.c.l.b16 %v351
    %v696 = vunpack.c.h.b16 %v351
    %v697 = vunpack.c.l.b16 %v352
    %v698 = vunpack.c.h.b16 %v352
    %v699 = vunpack.c.l.b16 %v353
    %v700 = vunpack.c.h.b16 %v353
    %v701 = vunpack.c.l.b16 %v354
    %v702 = vunpack.c.h.b16 %v354
    %v703 = vunpack.c.l.b16 %v355
    %v704 = vunpack.c.h.b16 %v355
    %v705 = vunpack.c.l.b16 %v356
    %v706 = vunpack.c.h.b16 %v356
    %v707 = vunpack.c.l.b16 %v357
    %v708 = vunpack.c.h.b16 %v357
    %v709 = vunpack.c.l.b16 %v358
    %v710 = vunpack.c.h.b16 %v358
    %v711 = vunpack.c.l.b16 %v359
    %v712 = vunpack.c.h.b16 %v359
    %v713 = vunpack.c.l.b16 %v360
    %v714 = vunpack.c.h.b16 %v360
    %v715 = vunpack.c.l.b16 %v361
    %v716 = vunpack.c.h.b16 %v361
    %v717 = vunpack.c.l.b16 %v362
    %v718 = vunpack.c.h.b16 %v362
    %v719 = vunpack.c.l.b16 %v363
    %v720 = vunpack.c.h.b16 %v363
    %v721 = vunpack.c.l.b16 %v364
    %v722 = vunpack.c.h.b16 %v364
    %v723 = vunpack.c.l.b16 %v365
    %v724 = vunpack.c.h.b16 %v365
    %v725 = vunpack.c.l.b16 %v366
    %v726 = vunpack.c.h.b16 %v366
    %v727 = vunpack.c.l.b16 %v367
    %v728 = vunpack.c.h.b16 %v367
    %v729 = vunpack.c.l.b16 %v368
    %v730 = vunpack.c.h.b16 %v368
    %v731 = vunpack.c.l.b16 %v369
    %v732 = vunpack.c.h.b16 %v369
    %v733 = vunpack.c.l.b16 %v370
    %v734 = vunpack.c.h.b16 %v370
    %v735 = vunpack.c.l.b16 %v371
    %v736 = vunpack.c.h.b16 %v371
    %v737 = vunpack.c.l.b16 %v372
    %v738 = vunpack.c.h.b16 %v372
    %v739 = vunpack.c.l.b16 %v373
    %v740 = vunpack.c.h.b16 %v373
    %v741 = vunpack.c.l.b16 %v374
    %v742 = vunpack.c.h.b16 %v374
    %v743 = vunpack.c.l.b16 %v375
    %v744 = vunpack.c.h.b16 %v375
    %v745 = vunpack.c.l.b16 %v376
    %v746 = vunpack.c.h.b16 %v376
    %v747 = vunpack.c.l.b16 %v377
    %v748 = vunpack.c.h.b16 %v377
    %v749 = vunpack.c.l.b16 %v378
    %v750 = vunpack.c.h.b16 %v378
    %v751 = vunpack.c.l.b16 %v379
    %v752 = vunpack.c.h.b16 %v379
    %v753 = vunpack.c.l.b16 %v380
    %v754 = vunpack.c.h.b16 %v380
    %v755 = vunpack.c.l.b16 %v381
    %v756 = vunpack.c.h.b16 %v381
    %v757 = vunpack.c.l.b16 %v382
    %v758 = vunpack.c.h.b16 %v382
    %v759 = vunpack.c.l.b16 %v383
    %v760 = vunpack.c.h.b16 %v383
    %v761 = vunpack.c.l.b16 %v384
    %v762 = vunpack.c.h.b16 %v384
    %v763 = vunpack.c.l.b16 %v385
    %v764 = vunpack.c.h.b16 %v385
    %v765 = vunpack.c.l.b16 %v386
    %v766 = vunpack.c.h.b16 %v386
    %v767 = vunpack.c.l.b16 %v387
    %v768 = vunpack.c.h.b16 %v387
    %v769 = vunpack.c.l.b16 %v388
    %v770 = vunpack.c.h.b16 %v388
    %v771 = vunpack.c.l.b16 %v389
    %v772 = vunpack.c.h.b16 %v389
    %v773 = vunpack.c.l.b16 %v390
    %v774 = vunpack.c.h.b16 %v390
    %v775 = vunpack.c.l.b16 %v391
    %v776 = vunpack.c.h.b16 %v391
    %v777 = vunpack.c.l.b16 %v392
    %v778 = vunpack.c.h.b16 %v392
    %v779 = vunpack.c.l.b16 %v393
    %v780 = vunpack.c.h.b16 %v393
    %v781 = vunpack.c.l.b16 %v394
    %v782 = vunpack.c.h.b16 %v394
    %v783 = vunpack.c.l.b16 %v395
    %v784 = vunpack.c.h.b16 %v395
    %v785 = vunpack.c.l.b16 %v396
    %v786 = vunpack.c.h.b16 %v396
    %v787 = vunpack.c.l.b16 %v397
    %v788 = vunpack.c.h.b16 %v397
    %v789 = vunpack.c.l.b16 %v398
    %v790 = vunpack.c.h.b16 %v398
    %v791 = vunpack.c.l.b16 %v399
    %v792 = vunpack.c.h.b16 %v399
    %v793 = vunpack.c.l.b16 %v400
    %v794 = vunpack.c.h.b16 %v400
    %v795 = vunpack.c.l.b16 %v401
    %v796 = vunpack.c.h.b16 %v401
    %v797 = vunpack.c.l.b16 %v402
    %v798 = vunpack.c.h.b16 %v402
    %v799 = vunpack.c.l.b16 %v403
    %v800 = vunpack.c.h.b16 %v403
    %v801 = vunpack.c.l.b16 %v404
    %v802 = vunpack.c.h.b16 %v404
    %v803 = vunpack.c.l.b16 %v405
    %v804 = vunpack.c.h.b16 %v405
    %v805 = vunpack.c.l.b16 %v406
    %v806 = vunpack.c.h.b16 %v406
    %v807 = vunpack.c.l.b16 %v407
    %v808 = vunpack.c.h.b16 %v407
    %v809 = vunpack.c.l.b16 %v408
    %v810 = vunpack.c.h.b16 %v408
    %v811 = vunpack.c.l.b16 %v409
    %v812 = vunpack.c.h.b16 %v409
    %v813 = vunpack.c.l.b16 %v410
    %v814 = vunpack.c.h.b16 %v410
    %v815 = vunpack.c.l.b16 %v411
    %v816 = vunpack.c.h.b16 %v411
    %v817 = vunpack.c.l.b16 %v412
    %v818 = vunpack.c.h.b16 %v412
    %v819 = vpack.c.b16 %v567, %v563
    %v820 = vpack.c.b16 %v568, %v564
    %v821 = vpack.c.b16 %v569, %v565
    %v822 = vpack.c.b16 %v570, %v566
    %v823 = vpack.c.b16 %v575, %v571
    %v824 = vpack.c.b16 %v576, %v572
    %v825 = vpack.c.b16 %v577, %v573
    %v826 = vpack.c.b16 %v578, %v574
    %v827 = vpack.c.b16 %v583, %v579
    %v828 = vpack.c.b16 %v584, %v580
    %v829 = vpack.c.b16 %v585, %v581
    %v830 = vpack.c.b16 %v586, %v582
    %v831 = vpack.c.b16 %v591, %v587
    %v832 = vpack.c.b16 %v592, %v588
    %v833 = vpack.c.b16 %v593, %v589
    %v834 = vpack.c.b16 %v594, %v590
    %v835 = vpack.c.b16 %v599, %v595
    %v836 = vpack.c.b16 %v600, %v596
    %v837 = vpack.c.b16 %v601, %v597
    %v838 = vpack.c.b16 %v602, %v598
    %v839 = vpack.c.b16 %v607, %v603
    %v840 = vpack.c.b16 %v608, %v604
    %v841 = vpack.c.b16 %v609, %v605
    %v842 = vpack.c.b16 %v610, %v606
    %v843 = vpack.c.b16 %v615, %v611
    %v844 = vpack.c.b16 %v616, %v612
    %v845 = vpack.c.b16 %v617, %v613
    %v846 = vpack.c.b16 %v618, %v614
    %v847 = vpack.c.b16 %v623, %v619
    %v848 = vpack.c.b16 %v624, %v620
    %v849 = vpack.c.b16 %v625, %v621
    %v850 = vpack.c.b16 %v626, %v622
    %v851 = vpack.c.b16 %v631, %v627
    %v852 = vpack.c.b16 %v632, %v628
    %v853 = vpack.c.b16 %v633, %v629
    %v854 = vpack.c.b16 %v634, %v630
    %v855 = vpack.c.b16 %v639, %v635
    %v856 = vpack.c.b16 %v640, %v636
    %v857 = vpack.c.b16 %v641, %v637
    %v858 = vpack.c.b16 %v642, %v638
    %v859 = vpack.c.b16 %v647, %v643
    %v860 = vpack.c.b16 %v648, %v644
    %v861 = vpack.c.b16 %v649, %v645
    %v862 = vpack.c.b16 %v650, %v646
    %v863 = vpack.c.b16 %v655, %v651
    %v864 = vpack.c.b16 %v656, %v652
    %v865 = vpack.c.b16 %v657, %v653
    %v866 = vpack.c.b16 %v658, %v654
    %v867 = vpack.c.b16 %v663, %v659
    %v868 = vpack.c.b16 %v664, %v660
    %v869 = vpack.c.b16 %v665, %v661
    %v870 = vpack.c.b16 %v666, %v662
    %v871 = vpack.c.b16 %v671, %v667
    %v872 = vpack.c.b16 %v672, %v668
    %v873 = vpack.c.b16 %v673, %v669
    %v874 = vpack.c.b16 %v674, %v670
    %v875 = vpack.c.b16 %v679, %v675
    %v876 = vpack.c.b16 %v680, %v676
    %v877 = vpack.c.b16 %v681, %v677
    %v878 = vpack.c.b16 %v682, %v678
    %v879 = vpack.c.b16 %v687, %v683
    %v880 = vpack.c.b16 %v688, %v684
    %v881 = vpack.c.b16 %v689, %v685
    %v882 = vpack.c.b16 %v690, %v686
    %v883 = vpack.c.b16 %v695, %v691
    %v884 = vpack.c.b16 %v696, %v692
    %v885 = vpack.c.b16 %v697, %v693
    %v886 = vpack.c.b16 %v698, %v694
    %v887 = vpack.c.b16 %v703, %v699
    %v888 = vpack.c.b16 %v704, %v700
    %v889 = vpack.c.b16 %v705, %v701
    %v890 = vpack.c.b16 %v706, %v702
    %v891 = vpack.c.b16 %v711, %v707
    %v892 = vpack.c.b16 %v712, %v708
    %v893 = vpack.c.b16 %v713, %v709
    %v894 = vpack.c.b16 %v714, %v710
    %v895 = vpack.c.b16 %v719, %v715
    %v896 = vpack.c.b16 %v720, %v716
    %v897 = vpack.c.b16 %v721, %v717
    %v898 = vpack.c.b16 %v722, %v718
    %v899 = vpack.c.b16 %v727, %v723
    %v900 = vpack.c.b16 %v728, %v724
    %v901 = vpack.c.b16 %v729, %v725
    %v902 = vpack.c.b16 %v730, %v726
    %v903 = vpack.c.b16 %v735, %v731
    %v904 = vpack.c.b16 %v736, %v732
    %v905 = vpack.c.b16 %v737, %v733
    %v906 = vpack.c.b16 %v738, %v734
    %v907 = vpack.c.b16 %v743, %v739
    %v908 = vpack.c.b16 %v744, %v740
    %v909 = vpack.c.b16 %v745, %v741
    %v910 = vpack.c.b16 %v746, %v742
    %v911 = vpack.c.b16 %v751, %v747
    %v912 = vpack.c.b16 %v752, %v748
    %v913 = vpack.c.b16 %v753, %v749
    %v914 = vpack.c.b16 %v754, %v750
    %v915 = vpack.c.b16 %v759, %v755
    %v916 = vpack.c.b16 %v760, %v756
    %v917 = vpack.c.b16 %v761, %v757
    %v918 = vpack.c.b16 %v762, %v758
    %v919 = vpack.c.b16 %v767, %v763
    %v920 = vpack.c.b16 %v768, %v764
    %v921 = vpack.c.b16 %v769, %v765
    %v922 = vpack.c.b16 %v770, %v766
    %v923 = vpack.c.b16 %v775, %v771
    %v924 = vpack.c.b16 %v776, %v772
    %v925 = vpack.c.b16 %v777, %v773
    %v926 = vpack.c.b16 %v778, %v774
    %v927 = vpack.c.b16 %v783, %v779
    %v928 = vpack.c.b16 %v784, %v780
    %v929 = vpack.c.b16 %v785, %v781
    %v930 = vpack.c.b16 %v786, %v782
    %v931 = vpack.c.b16 %v791, %v787
    %v932 = vpack.c.b16 %v792, %v788
    %v933 = vpack.c.b16 %v793, %v789
    %v934 = vpack.c.b16 %v794, %v790
    %v935 = vpack.c.b16 %v799, %v795
    %v936 = vpack.c.b16 %v800, %v796
    %v937 = vpack.c.b16 %v801, %v797
    %v938 = vpack.c.b16 %v802, %v798
    %v939 = vpack.c.b16 %v807, %v803
    %v940 = vpack.c.b16 %v808, %v804
    %v941 = vpack.c.b16 %v809, %v805
    %v942 = vpack.c.b16 %v810, %v806
    %v943 = vpack.c.b16 %v815, %v811
    %v944 = vpack.c.b16 %v816, %v812
    %v945 = vpack.c.b16 %v817, %v813
    %v946 = vpack.c.b16 %v818, %v814
    %1075 = vmatprep.subr.bf16.mxu0 %v848
    %1076 = vmatpush1.bf16.msra.mxu0 %v847
    %1077 = vmatprep.subr.bf16.mxu0 %v844
    %1078 = vmatpush1.bf16.msra.mxu0 %v843
    %1079 = vmatprep.subr.bf16.mxu0 %v840
    %1080 = vmatpush1.bf16.msra.mxu0 %v839
    %1081 = vmatprep.subr.bf16.mxu0 %v836
    %1082 = vmatpush1.bf16.msra.mxu0 %v835
    %1083 = vmatprep.subr.bf16.mxu0 %v832
    %1084 = vmatpush1.bf16.msra.mxu0 %v831
    %1085 = vmatprep.subr.bf16.mxu0 %v828
    %1086 = vmatpush1.bf16.msra.mxu0 %v827
    %1087 = vmatprep.subr.bf16.mxu0 %v824
    %1088 = vmatpush1.bf16.msra.mxu0 %v823
    %1089 = vmatprep.subr.bf16.mxu0 %v820
    %1090 = vmatpush1.bf16.msra.mxu0 %v819
    %1091 = vmatprep.subr.bf16.mxu0 %v880
    %1092 = vmatpush2.bf16.msra.mxu0 %v879
    %1093 = vmatprep.subr.bf16.mxu0 %v876
    %1094 = vmatpush2.bf16.msra.mxu0 %v875
    %1095 = vmatprep.subr.bf16.mxu0 %v872
    %1096 = vmatpush2.bf16.msra.mxu0 %v871
    %1097 = vmatprep.subr.bf16.mxu0 %v868
    %1098 = vmatpush2.bf16.msra.mxu0 %v867
    %1099 = vmatprep.subr.bf16.mxu0 %v864
    %1100 = vmatpush2.bf16.msra.mxu0 %v863
    %1101 = vmatprep.subr.bf16.mxu0 %v860
    %1102 = vmatpush2.bf16.msra.mxu0 %v859
    %1103 = vmatprep.subr.bf16.mxu0 %v856
    %1104 = vmatpush2.bf16.msra.mxu0 %v855
    %1105 = vmatprep.subr.bf16.mxu0 %v852
    %1106 = vmatpush2.bf16.msra.mxu0 %v851
    %1107 = vmatprep.mubr.bf16.mxu0 %v282
    %1108 = vmatmul.mubr.bf16.gmra.mxu0 %v281
    %v1109 = vpop.f32.mrf.mxu0
    %v1110 = vadd.f32 %v418, %v1109
    %v1111 = vpop.f32.mrf.mxu0
    %v1112 = vadd.f32 %v422, %v1111
    %v1113 = vpop.f32.mrf.mxu0
    %v1114 = vadd.f32 %v418, %v1113
    %v1115 = vpop.f32.mrf.mxu0
    %v1116 = vadd.f32 %v422, %v1115
    %1117 = vdwg.mxu0
    %1118 = vmatprep.subr.bf16.mxu0 %v912
    %1119 = vmatpush1.bf16.msra.mxu0 %v911
    %1120 = vmatprep.subr.bf16.mxu0 %v908
    %1121 = vmatpush1.bf16.msra.mxu0 %v907
    %1122 = vmatprep.subr.bf16.mxu0 %v904
    %1123 = vmatpush1.bf16.msra.mxu0 %v903
    %1124 = vmatprep.subr.bf16.mxu0 %v900
    %1125 = vmatpush1.bf16.msra.mxu0 %v899
    %1126 = vmatprep.subr.bf16.mxu0 %v896
    %1127 = vmatpush1.bf16.msra.mxu0 %v895
    %1128 = vmatprep.subr.bf16.mxu0 %v892
    %1129 = vmatpush1.bf16.msra.mxu0 %v891
    %1130 = vmatprep.subr.bf16.mxu0 %v888
    %1131 = vmatpush1.bf16.msra.mxu0 %v887
    %1132 = vmatprep.subr.bf16.mxu0 %v884
    %1133 = vmatpush1.bf16.msra.mxu0 %v883
    %1134 = vmatprep.subr.bf16.mxu0 %v944
    %1135 = vmatpush2.bf16.msra.mxu0 %v943
    %1136 = vmatprep.subr.bf16.mxu0 %v940
    %1137 = vmatpush2.bf16.msra.mxu0 %v939
    %1138 = vmatprep.subr.bf16.mxu0 %v936
    %1139 = vmatpush2.bf16.msra.mxu0 %v935
    %1140 = vmatprep.subr.bf16.mxu0 %v932
    %1141 = vmatpush2.bf16.msra.mxu0 %v931
    %1142 = vmatprep.subr.bf16.mxu0 %v928
    %1143 = vmatpush2.bf16.msra.mxu0 %v927
    %1144 = vmatprep.subr.bf16.mxu0 %v924
    %1145 = vmatpush2.bf16.msra.mxu0 %v923
    %1146 = vmatprep.subr.bf16.mxu0 %v920
    %1147 = vmatpush2.bf16.msra.mxu0 %v919
    %1148 = vmatprep.subr.bf16.mxu0 %v916
    %1149 = vmatpush2.bf16.msra.mxu0 %v915
    %1150 = vmatprep.mubr.bf16.mxu0 %v284
    %1151 = vmatmul.mubr.bf16.gmra.mxu0 %v283
    %v1152 = vpop.f32.mrf.mxu0
    %v1153 = vadd.f32 %v1110, %v1152
    %v1154 = vpop.f32.mrf.mxu0
    %v1155 = vadd.f32 %v1112, %v1154
    %v1156 = vpop.f32.mrf.mxu0
    %v1157 = vadd.f32 %v1114, %v1156
    %v1158 = vpop.f32.mrf.mxu0
    %v1159 = vadd.f32 %v1116, %v1158
    %1160 = vdwg.mxu0
    %1161 = vmatprep.subr.bf16.mxu0 %v850
    %1162 = vmatpush1.bf16.msra.mxu0 %v849
    %1163 = vmatprep.subr.bf16.mxu0 %v846
    %1164 = vmatpush1.bf16.msra.mxu0 %v845
    %1165 = vmatprep.subr.bf16.mxu0 %v842
    %1166 = vmatpush1.bf16.msra.mxu0 %v841
    %1167 = vmatprep.subr.bf16.mxu0 %v838
    %1168 = vmatpush1.bf16.msra.mxu0 %v837
    %1169 = vmatprep.subr.bf16.mxu0 %v834
    %1170 = vmatpush1.bf16.msra.mxu0 %v833
    %1171 = vmatprep.subr.bf16.mxu0 %v830
    %1172 = vmatpush1.bf16.msra.mxu0 %v829
    %1173 = vmatprep.subr.bf16.mxu0 %v826
    %1174 = vmatpush1.bf16.msra.mxu0 %v825
    %1175 = vmatprep.subr.bf16.mxu0 %v822
    %1176 = vmatpush1.bf16.msra.mxu0 %v821
    %1177 = vmatprep.subr.bf16.mxu0 %v882
    %1178 = vmatpush2.bf16.msra.mxu0 %v881
    %1179 = vmatprep.subr.bf16.mxu0 %v878
    %1180 = vmatpush2.bf16.msra.mxu0 %v877
    %1181 = vmatprep.subr.bf16.mxu0 %v874
    %1182 = vmatpush2.bf16.msra.mxu0 %v873
    %1183 = vmatprep.subr.bf16.mxu0 %v870
    %1184 = vmatpush2.bf16.msra.mxu0 %v869
    %1185 = vmatprep.subr.bf16.mxu0 %v866
    %1186 = vmatpush2.bf16.msra.mxu0 %v865
    %1187 = vmatprep.subr.bf16.mxu0 %v862
    %1188 = vmatpush2.bf16.msra.mxu0 %v861
    %1189 = vmatprep.subr.bf16.mxu0 %v858
    %1190 = vmatpush2.bf16.msra.mxu0 %v857
    %1191 = vmatprep.subr.bf16.mxu0 %v854
    %1192 = vmatpush2.bf16.msra.mxu0 %v853
    %1193 = vmatprep.mubr.bf16.mxu0 %v282
    %1194 = vmatmul.mubr.bf16.gmra.mxu0 %v281
    %v1195 = vpop.f32.mrf.mxu0
    %v1196 = vadd.f32 %v426, %v1195
    %v1197 = vpop.f32.mrf.mxu0
    %v1198 = vadd.f32 %v430, %v1197
    %v1199 = vpop.f32.mrf.mxu0
    %v1200 = vadd.f32 %v426, %v1199
    %v1201 = vpop.f32.mrf.mxu0
    %v1202 = vadd.f32 %v430, %v1201
    %1203 = vdwg.mxu0
    %1204 = vmatprep.subr.bf16.mxu0 %v914
    %1205 = vmatpush1.bf16.msra.mxu0 %v913
    %1206 = vmatprep.subr.bf16.mxu0 %v910
    %1207 = vmatpush1.bf16.msra.mxu0 %v909
    %1208 = vmatprep.subr.bf16.mxu0 %v906
    %1209 = vmatpush1.bf16.msra.mxu0 %v905
    %1210 = vmatprep.subr.bf16.mxu0 %v902
    %1211 = vmatpush1.bf16.msra.mxu0 %v901
    %1212 = vmatprep.subr.bf16.mxu0 %v898
    %1213 = vmatpush1.bf16.msra.mxu0 %v897
    %1214 = vmatprep.subr.bf16.mxu0 %v894
    %1215 = vmatpush1.bf16.msra.mxu0 %v893
    %1216 = vmatprep.subr.bf16.mxu0 %v890
    %1217 = vmatpush1.bf16.msra.mxu0 %v889
    %1218 = vmatprep.subr.bf16.mxu0 %v886
    %1219 = vmatpush1.bf16.msra.mxu0 %v885
    %1220 = vmatprep.subr.bf16.mxu0 %v946
    %1221 = vmatpush2.bf16.msra.mxu0 %v945
    %1222 = vmatprep.subr.bf16.mxu0 %v942
    %1223 = vmatpush2.bf16.msra.mxu0 %v941
    %1224 = vmatprep.subr.bf16.mxu0 %v938
    %1225 = vmatpush2.bf16.msra.mxu0 %v937
    %1226 = vmatprep.subr.bf16.mxu0 %v934
    %1227 = vmatpush2.bf16.msra.mxu0 %v933
    %1228 = vmatprep.subr.bf16.mxu0 %v930
    %1229 = vmatpush2.bf16.msra.mxu0 %v929
    %1230 = vmatprep.subr.bf16.mxu0 %v926
    %1231 = vmatpush2.bf16.msra.mxu0 %v925
    %1232 = vmatprep.subr.bf16.mxu0 %v922
    %1233 = vmatpush2.bf16.msra.mxu0 %v921
    %1234 = vmatprep.subr.bf16.mxu0 %v918
    %1235 = vmatpush2.bf16.msra.mxu0 %v917
    %1236 = vmatprep.mubr.bf16.mxu0 %v284
    %1237 = vmatmul.mubr.bf16.gmra.mxu0 %v283
    %v1238 = vpop.f32.mrf.mxu0
    %v1239 = vadd.f32 %v1196, %v1238
    %v1240 = vpop.f32.mrf.mxu0
    %v1241 = vadd.f32 %v1198, %v1240
    %v1242 = vpop.f32.mrf.mxu0
    %v1243 = vadd.f32 %v1200, %v1242
    %v1244 = vpop.f32.mrf.mxu0
    %v1245 = vadd.f32 %v1202, %v1244
    %1246 = vdwg.mxu0
    %v1247 = vmax.f32 %v1153, 0.0
    %v1248 = vmax.f32 %v1155, 0.0
    %v1249 = vmax.f32 %v1239, 0.0
    %v1250 = vmax.f32 %v1241, 0.0
    %v1251 = vmax.f32 %v1157, 0.0
    %v1252 = vmax.f32 %v1159, 0.0
    %v1253 = vmax.f32 %v1243, 0.0
    %v1254 = vmax.f32 %v1245, 0.0
    %v1255 = vpack.c.bf16 %v1251, %v1247
    %v1256 = vpack.c.bf16 %v1252, %v1248
    %v1257 = vpack.c.bf16 %v1253, %v1249
    %v1258 = vpack.c.bf16 %v1254, %v1250
    %v1259 = vld [vmem:[#allocation10] sm:$0xff]
    %v1260 = vld [vmem:[#allocation10 + $0x8] sm:$0xff]
    %v1261 = vld [vmem:[#allocation10 + $0x10] sm:$0xff]
    %v1262 = vld [vmem:[#allocation10 + $0x18] sm:$0xff]
    %v1263 = vld [vmem:[#allocation10 + $0x20] sm:$0xff]
    %v1264 = vld [vmem:[#allocation10 + $0x28] sm:$0xff]
    %v1265 = vld [vmem:[#allocation10 + $0x30] sm:$0xff]
    %v1266 = vld [vmem:[#allocation10 + $0x38] sm:$0xff]
    %v1267 = vld [vmem:[#allocation10 + $0x40] sm:$0xff]
    %v1268 = vld [vmem:[#allocation10 + $0x48] sm:$0xff]
    %v1269 = vld [vmem:[#allocation10 + $0x50] sm:$0xff]
    %v1270 = vld [vmem:[#allocation10 + $0x58] sm:$0xff]
    %v1271 = vld [vmem:[#allocation10 + $0x60] sm:$0xff]
    %v1272 = vld [vmem:[#allocation10 + $0x68] sm:$0xff]
    %v1273 = vld [vmem:[#allocation10 + $0x70] sm:$0xff]
    %v1274 = vld [vmem:[#allocation10 + $0x78] sm:$0xff]
    %v1275 = vld [vmem:[#allocation10 + $0x80] sm:$0xff]
    %v1276 = vld [vmem:[#allocation10 + $0x88] sm:$0xff]
    %v1277 = vld [vmem:[#allocation10 + $0x90] sm:$0xff]
    %v1278 = vld [vmem:[#allocation10 + $0x98] sm:$0xff]
    %v1279 = vld [vmem:[#allocation10 + $0xa0] sm:$0xff]
    %v1280 = vld [vmem:[#allocation10 + $0xa8] sm:$0xff]
    %v1281 = vld [vmem:[#allocation10 + $0xb0] sm:$0xff]
    %v1282 = vld [vmem:[#allocation10 + $0xb8] sm:$0xff]
    %v1283 = vld [vmem:[#allocation10 + $0xc0] sm:$0xff]
    %v1284 = vld [vmem:[#allocation10 + $0xc8] sm:$0xff]
    %v1285 = vld [vmem:[#allocation10 + $0xd0] sm:$0xff]
    %v1286 = vld [vmem:[#allocation10 + $0xd8] sm:$0xff]
    %v1287 = vld [vmem:[#allocation10 + $0xe0] sm:$0xff]
    %v1288 = vld [vmem:[#allocation10 + $0xe8] sm:$0xff]
    %v1289 = vld [vmem:[#allocation10 + $0xf0] sm:$0xff]
    %v1290 = vld [vmem:[#allocation10 + $0xf8] sm:$0xff]
    %v1291 = vld [vmem:[#allocation10 + $0x100] sm:$0xff]
    %v1292 = vld [vmem:[#allocation10 + $0x108] sm:$0xff]
    %v1293 = vld [vmem:[#allocation10 + $0x110] sm:$0xff]
    %v1294 = vld [vmem:[#allocation10 + $0x118] sm:$0xff]
    %v1295 = vld [vmem:[#allocation10 + $0x120] sm:$0xff]
    %v1296 = vld [vmem:[#allocation10 + $0x128] sm:$0xff]
    %v1297 = vld [vmem:[#allocation10 + $0x130] sm:$0xff]
    %v1298 = vld [vmem:[#allocation10 + $0x138] sm:$0xff]
    %v1299 = vld [vmem:[#allocation10 + $0x140] sm:$0xff]
    %v1300 = vld [vmem:[#allocation10 + $0x148] sm:$0xff]
    %v1301 = vld [vmem:[#allocation10 + $0x150] sm:$0xff]
    %v1302 = vld [vmem:[#allocation10 + $0x158] sm:$0xff]
    %v1303 = vld [vmem:[#allocation10 + $0x160] sm:$0xff]
    %v1304 = vld [vmem:[#allocation10 + $0x168] sm:$0xff]
    %v1305 = vld [vmem:[#allocation10 + $0x170] sm:$0xff]
    %v1306 = vld [vmem:[#allocation10 + $0x178] sm:$0xff]
    %v1307 = vld [vmem:[#allocation10 + $0x180] sm:$0xff]
    %v1308 = vld [vmem:[#allocation10 + $0x188] sm:$0xff]
    %v1309 = vld [vmem:[#allocation10 + $0x190] sm:$0xff]
    %v1310 = vld [vmem:[#allocation10 + $0x198] sm:$0xff]
    %v1311 = vld [vmem:[#allocation10 + $0x1a0] sm:$0xff]
    %v1312 = vld [vmem:[#allocation10 + $0x1a8] sm:$0xff]
    %v1313 = vld [vmem:[#allocation10 + $0x1b0] sm:$0xff]
    %v1314 = vld [vmem:[#allocation10 + $0x1b8] sm:$0xff]
    %v1315 = vld [vmem:[#allocation10 + $0x1c0] sm:$0xff]
    %v1316 = vld [vmem:[#allocation10 + $0x1c8] sm:$0xff]
    %v1317 = vld [vmem:[#allocation10 + $0x1d0] sm:$0xff]
    %v1318 = vld [vmem:[#allocation10 + $0x1d8] sm:$0xff]
    %v1319 = vld [vmem:[#allocation10 + $0x1e0] sm:$0xff]
    %v1320 = vld [vmem:[#allocation10 + $0x1e8] sm:$0xff]
    %v1321 = vld [vmem:[#allocation10 + $0x1f0] sm:$0xff]
    %v1322 = vld [vmem:[#allocation10 + $0x1f8] sm:$0xff]
    %v1323 = vld [vmem:[#allocation10 + $0x200] sm:$0xff]
    %v1324 = vld [vmem:[#allocation10 + $0x208] sm:$0xff]
    %v1325 = vld [vmem:[#allocation10 + $0x210] sm:$0xff]
    %v1326 = vld [vmem:[#allocation10 + $0x218] sm:$0xff]
    %v1327 = vld [vmem:[#allocation10 + $0x220] sm:$0xff]
    %v1328 = vld [vmem:[#allocation10 + $0x228] sm:$0xff]
    %v1329 = vld [vmem:[#allocation10 + $0x230] sm:$0xff]
    %v1330 = vld [vmem:[#allocation10 + $0x238] sm:$0xff]
    %v1331 = vld [vmem:[#allocation10 + $0x240] sm:$0xff]
    %v1332 = vld [vmem:[#allocation10 + $0x248] sm:$0xff]
    %v1333 = vld [vmem:[#allocation10 + $0x250] sm:$0xff]
    %v1334 = vld [vmem:[#allocation10 + $0x258] sm:$0xff]
    %v1335 = vld [vmem:[#allocation10 + $0x260] sm:$0xff]
    %v1336 = vld [vmem:[#allocation10 + $0x268] sm:$0xff]
    %v1337 = vld [vmem:[#allocation10 + $0x270] sm:$0xff]
    %v1338 = vld [vmem:[#allocation10 + $0x278] sm:$0xff]
    %v1339 = vld [vmem:[#allocation10 + $0x280] sm:$0xff]
    %v1340 = vld [vmem:[#allocation10 + $0x288] sm:$0xff]
    %v1341 = vld [vmem:[#allocation10 + $0x290] sm:$0xff]
    %v1342 = vld [vmem:[#allocation10 + $0x298] sm:$0xff]
    %v1343 = vld [vmem:[#allocation10 + $0x2a0] sm:$0xff]
    %v1344 = vld [vmem:[#allocation10 + $0x2a8] sm:$0xff]
    %v1345 = vld [vmem:[#allocation10 + $0x2b0] sm:$0xff]
    %v1346 = vld [vmem:[#allocation10 + $0x2b8] sm:$0xff]
    %v1347 = vld [vmem:[#allocation10 + $0x2c0] sm:$0xff]
    %v1348 = vld [vmem:[#allocation10 + $0x2c8] sm:$0xff]
    %v1349 = vld [vmem:[#allocation10 + $0x2d0] sm:$0xff]
    %v1350 = vld [vmem:[#allocation10 + $0x2d8] sm:$0xff]
    %v1351 = vld [vmem:[#allocation10 + $0x2e0] sm:$0xff]
    %v1352 = vld [vmem:[#allocation10 + $0x2e8] sm:$0xff]
    %v1353 = vld [vmem:[#allocation10 + $0x2f0] sm:$0xff]
    %v1354 = vld [vmem:[#allocation10 + $0x2f8] sm:$0xff]
    %v1355 = vld [vmem:[#allocation10 + $0x300] sm:$0xff]
    %v1356 = vld [vmem:[#allocation10 + $0x308] sm:$0xff]
    %v1357 = vld [vmem:[#allocation10 + $0x310] sm:$0xff]
    %v1358 = vld [vmem:[#allocation10 + $0x318] sm:$0xff]
    %v1359 = vld [vmem:[#allocation10 + $0x320] sm:$0xff]
    %v1360 = vld [vmem:[#allocation10 + $0x328] sm:$0xff]
    %v1361 = vld [vmem:[#allocation10 + $0x330] sm:$0xff]
    %v1362 = vld [vmem:[#allocation10 + $0x338] sm:$0xff]
    %v1363 = vld [vmem:[#allocation10 + $0x340] sm:$0xff]
    %v1364 = vld [vmem:[#allocation10 + $0x348] sm:$0xff]
    %v1365 = vld [vmem:[#allocation10 + $0x350] sm:$0xff]
    %v1366 = vld [vmem:[#allocation10 + $0x358] sm:$0xff]
    %v1367 = vld [vmem:[#allocation10 + $0x360] sm:$0xff]
    %v1368 = vld [vmem:[#allocation10 + $0x368] sm:$0xff]
    %v1369 = vld [vmem:[#allocation10 + $0x370] sm:$0xff]
    %v1370 = vld [vmem:[#allocation10 + $0x378] sm:$0xff]
    %v1371 = vld [vmem:[#allocation10 + $0x380] sm:$0xff]
    %v1372 = vld [vmem:[#allocation10 + $0x388] sm:$0xff]
    %v1373 = vld [vmem:[#allocation10 + $0x390] sm:$0xff]
    %v1374 = vld [vmem:[#allocation10 + $0x398] sm:$0xff]
    %v1375 = vld [vmem:[#allocation10 + $0x3a0] sm:$0xff]
    %v1376 = vld [vmem:[#allocation10 + $0x3a8] sm:$0xff]
    %v1377 = vld [vmem:[#allocation10 + $0x3b0] sm:$0xff]
    %v1378 = vld [vmem:[#allocation10 + $0x3b8] sm:$0xff]
    %v1379 = vld [vmem:[#allocation10 + $0x3c0] sm:$0xff]
    %v1380 = vld [vmem:[#allocation10 + $0x3c8] sm:$0xff]
    %v1381 = vld [vmem:[#allocation10 + $0x3d0] sm:$0xff]
    %v1382 = vld [vmem:[#allocation10 + $0x3d8] sm:$0xff]
    %v1383 = vld [vmem:[#allocation10 + $0x3e0] sm:$0xff]
    %v1384 = vld [vmem:[#allocation10 + $0x3e8] sm:$0xff]
    %v1385 = vld [vmem:[#allocation10 + $0x3f0] sm:$0xff]
    %v1386 = vld [vmem:[#allocation10 + $0x3f8] sm:$0xff]
    %v1387 = vld [vmem:[%s6] sm:$0xf]
    %v1389 = vlaneseq
    %v1390 = vshrl.u32 %v1389, 7
    %v1391 = vsub.s32 0, %v1390
    %v1392 = vrot.slane %v1387, %v1391
    %v1393 = vlaneseq
    %v1394 = vshrl.u32 %v1393, 7
    %v1395 = vsub.s32 1, %v1394
    %v1396 = vrot.slane %v1387, %v1395
    %v1397 = vlaneseq
    %v1398 = vshrl.u32 %v1397, 7
    %v1399 = vsub.s32 2, %v1398
    %v1400 = vrot.slane %v1387, %v1399
    %v1401 = vlaneseq
    %v1402 = vshrl.u32 %v1401, 7
    %v1403 = vsub.s32 3, %v1402
    %v1404 = vrot.slane %v1387, %v1403
    %v1537 = vunpack.c.l.b16 %v1259
    %v1538 = vunpack.c.h.b16 %v1259
    %v1539 = vunpack.c.l.b16 %v1260
    %v1540 = vunpack.c.h.b16 %v1260
    %v1541 = vunpack.c.l.b16 %v1261
    %v1542 = vunpack.c.h.b16 %v1261
    %v1543 = vunpack.c.l.b16 %v1262
    %v1544 = vunpack.c.h.b16 %v1262
    %v1545 = vunpack.c.l.b16 %v1263
    %v1546 = vunpack.c.h.b16 %v1263
    %v1547 = vunpack.c.l.b16 %v1264
    %v1548 = vunpack.c.h.b16 %v1264
    %v1549 = vunpack.c.l.b16 %v1265
    %v1550 = vunpack.c.h.b16 %v1265
    %v1551 = vunpack.c.l.b16 %v1266
    %v1552 = vunpack.c.h.b16 %v1266
    %v1553 = vunpack.c.l.b16 %v1267
    %v1554 = vunpack.c.h.b16 %v1267
    %v1555 = vunpack.c.l.b16 %v1268
    %v1556 = vunpack.c.h.b16 %v1268
    %v1557 = vunpack.c.l.b16 %v1269
    %v1558 = vunpack.c.h.b16 %v1269
    %v1559 = vunpack.c.l.b16 %v1270
    %v1560 = vunpack.c.h.b16 %v1270
    %v1561 = vunpack.c.l.b16 %v1271
    %v1562 = vunpack.c.h.b16 %v1271
    %v1563 = vunpack.c.l.b16 %v1272
    %v1564 = vunpack.c.h.b16 %v1272
    %v1565 = vunpack.c.l.b16 %v1273
    %v1566 = vunpack.c.h.b16 %v1273
    %v1567 = vunpack.c.l.b16 %v1274
    %v1568 = vunpack.c.h.b16 %v1274
    %v1569 = vunpack.c.l.b16 %v1275
    %v1570 = vunpack.c.h.b16 %v1275
    %v1571 = vunpack.c.l.b16 %v1276
    %v1572 = vunpack.c.h.b16 %v1276
    %v1573 = vunpack.c.l.b16 %v1277
    %v1574 = vunpack.c.h.b16 %v1277
    %v1575 = vunpack.c.l.b16 %v1278
    %v1576 = vunpack.c.h.b16 %v1278
    %v1577 = vunpack.c.l.b16 %v1279
    %v1578 = vunpack.c.h.b16 %v1279
    %v1579 = vunpack.c.l.b16 %v1280
    %v1580 = vunpack.c.h.b16 %v1280
    %v1581 = vunpack.c.l.b16 %v1281
    %v1582 = vunpack.c.h.b16 %v1281
    %v1583 = vunpack.c.l.b16 %v1282
    %v1584 = vunpack.c.h.b16 %v1282
    %v1585 = vunpack.c.l.b16 %v1283
    %v1586 = vunpack.c.h.b16 %v1283
    %v1587 = vunpack.c.l.b16 %v1284
    %v1588 = vunpack.c.h.b16 %v1284
    %v1589 = vunpack.c.l.b16 %v1285
    %v1590 = vunpack.c.h.b16 %v1285
    %v1591 = vunpack.c.l.b16 %v1286
    %v1592 = vunpack.c.h.b16 %v1286
    %v1593 = vunpack.c.l.b16 %v1287
    %v1594 = vunpack.c.h.b16 %v1287
    %v1595 = vunpack.c.l.b16 %v1288
    %v1596 = vunpack.c.h.b16 %v1288
    %v1597 = vunpack.c.l.b16 %v1289
    %v1598 = vunpack.c.h.b16 %v1289
    %v1599 = vunpack.c.l.b16 %v1290
    %v1600 = vunpack.c.h.b16 %v1290
    %v1601 = vunpack.c.l.b16 %v1291
    %v1602 = vunpack.c.h.b16 %v1291
    %v1603 = vunpack.c.l.b16 %v1292
    %v1604 = vunpack.c.h.b16 %v1292
    %v1605 = vunpack.c.l.b16 %v1293
    %v1606 = vunpack.c.h.b16 %v1293
    %v1607 = vunpack.c.l.b16 %v1294
    %v1608 = vunpack.c.h.b16 %v1294
    %v1609 = vunpack.c.l.b16 %v1295
    %v1610 = vunpack.c.h.b16 %v1295
    %v1611 = vunpack.c.l.b16 %v1296
    %v1612 = vunpack.c.h.b16 %v1296
    %v1613 = vunpack.c.l.b16 %v1297
    %v1614 = vunpack.c.h.b16 %v1297
    %v1615 = vunpack.c.l.b16 %v1298
    %v1616 = vunpack.c.h.b16 %v1298
    %v1617 = vunpack.c.l.b16 %v1299
    %v1618 = vunpack.c.h.b16 %v1299
    %v1619 = vunpack.c.l.b16 %v1300
    %v1620 = vunpack.c.h.b16 %v1300
    %v1621 = vunpack.c.l.b16 %v1301
    %v1622 = vunpack.c.h.b16 %v1301
    %v1623 = vunpack.c.l.b16 %v1302
    %v1624 = vunpack.c.h.b16 %v1302
    %v1625 = vunpack.c.l.b16 %v1303
    %v1626 = vunpack.c.h.b16 %v1303
    %v1627 = vunpack.c.l.b16 %v1304
    %v1628 = vunpack.c.h.b16 %v1304
    %v1629 = vunpack.c.l.b16 %v1305
    %v1630 = vunpack.c.h.b16 %v1305
    %v1631 = vunpack.c.l.b16 %v1306
    %v1632 = vunpack.c.h.b16 %v1306
    %v1633 = vunpack.c.l.b16 %v1307
    %v1634 = vunpack.c.h.b16 %v1307
    %v1635 = vunpack.c.l.b16 %v1308
    %v1636 = vunpack.c.h.b16 %v1308
    %v1637 = vunpack.c.l.b16 %v1309
    %v1638 = vunpack.c.h.b16 %v1309
    %v1639 = vunpack.c.l.b16 %v1310
    %v1640 = vunpack.c.h.b16 %v1310
    %v1641 = vunpack.c.l.b16 %v1311
    %v1642 = vunpack.c.h.b16 %v1311
    %v1643 = vunpack.c.l.b16 %v1312
    %v1644 = vunpack.c.h.b16 %v1312
    %v1645 = vunpack.c.l.b16 %v1313
    %v1646 = vunpack.c.h.b16 %v1313
    %v1647 = vunpack.c.l.b16 %v1314
    %v1648 = vunpack.c.h.b16 %v1314
    %v1649 = vunpack.c.l.b16 %v1315
    %v1650 = vunpack.c.h.b16 %v1315
    %v1651 = vunpack.c.l.b16 %v1316
    %v1652 = vunpack.c.h.b16 %v1316
    %v1653 = vunpack.c.l.b16 %v1317
    %v1654 = vunpack.c.h.b16 %v1317
    %v1655 = vunpack.c.l.b16 %v1318
    %v1656 = vunpack.c.h.b16 %v1318
    %v1657 = vunpack.c.l.b16 %v1319
    %v1658 = vunpack.c.h.b16 %v1319
    %v1659 = vunpack.c.l.b16 %v1320
    %v1660 = vunpack.c.h.b16 %v1320
    %v1661 = vunpack.c.l.b16 %v1321
    %v1662 = vunpack.c.h.b16 %v1321
    %v1663 = vunpack.c.l.b16 %v1322
    %v1664 = vunpack.c.h.b16 %v1322
    %v1665 = vunpack.c.l.b16 %v1323
    %v1666 = vunpack.c.h.b16 %v1323
    %v1667 = vunpack.c.l.b16 %v1324
    %v1668 = vunpack.c.h.b16 %v1324
    %v1669 = vunpack.c.l.b16 %v1325
    %v1670 = vunpack.c.h.b16 %v1325
    %v1671 = vunpack.c.l.b16 %v1326
    %v1672 = vunpack.c.h.b16 %v1326
    %v1673 = vunpack.c.l.b16 %v1327
    %v1674 = vunpack.c.h.b16 %v1327
    %v1675 = vunpack.c.l.b16 %v1328
    %v1676 = vunpack.c.h.b16 %v1328
    %v1677 = vunpack.c.l.b16 %v1329
    %v1678 = vunpack.c.h.b16 %v1329
    %v1679 = vunpack.c.l.b16 %v1330
    %v1680 = vunpack.c.h.b16 %v1330
    %v1681 = vunpack.c.l.b16 %v1331
    %v1682 = vunpack.c.h.b16 %v1331
    %v1683 = vunpack.c.l.b16 %v1332
    %v1684 = vunpack.c.h.b16 %v1332
    %v1685 = vunpack.c.l.b16 %v1333
    %v1686 = vunpack.c.h.b16 %v1333
    %v1687 = vunpack.c.l.b16 %v1334
    %v1688 = vunpack.c.h.b16 %v1334
    %v1689 = vunpack.c.l.b16 %v1335
    %v1690 = vunpack.c.h.b16 %v1335
    %v1691 = vunpack.c.l.b16 %v1336
    %v1692 = vunpack.c.h.b16 %v1336
    %v1693 = vunpack.c.l.b16 %v1337
    %v1694 = vunpack.c.h.b16 %v1337
    %v1695 = vunpack.c.l.b16 %v1338
    %v1696 = vunpack.c.h.b16 %v1338
    %v1697 = vunpack.c.l.b16 %v1339
    %v1698 = vunpack.c.h.b16 %v1339
    %v1699 = vunpack.c.l.b16 %v1340
    %v1700 = vunpack.c.h.b16 %v1340
    %v1701 = vunpack.c.l.b16 %v1341
    %v1702 = vunpack.c.h.b16 %v1341
    %v1703 = vunpack.c.l.b16 %v1342
    %v1704 = vunpack.c.h.b16 %v1342
    %v1705 = vunpack.c.l.b16 %v1343
    %v1706 = vunpack.c.h.b16 %v1343
    %v1707 = vunpack.c.l.b16 %v1344
    %v1708 = vunpack.c.h.b16 %v1344
    %v1709 = vunpack.c.l.b16 %v1345
    %v1710 = vunpack.c.h.b16 %v1345
    %v1711 = vunpack.c.l.b16 %v1346
    %v1712 = vunpack.c.h.b16 %v1346
    %v1713 = vunpack.c.l.b16 %v1347
    %v1714 = vunpack.c.h.b16 %v1347
    %v1715 = vunpack.c.l.b16 %v1348
    %v1716 = vunpack.c.h.b16 %v1348
    %v1717 = vunpack.c.l.b16 %v1349
    %v1718 = vunpack.c.h.b16 %v1349
    %v1719 = vunpack.c.l.b16 %v1350
    %v1720 = vunpack.c.h.b16 %v1350
    %v1721 = vunpack.c.l.b16 %v1351
    %v1722 = vunpack.c.h.b16 %v1351
    %v1723 = vunpack.c.l.b16 %v1352
    %v1724 = vunpack.c.h.b16 %v1352
    %v1725 = vunpack.c.l.b16 %v1353
    %v1726 = vunpack.c.h.b16 %v1353
    %v1727 = vunpack.c.l.b16 %v1354
    %v1728 = vunpack.c.h.b16 %v1354
    %v1729 = vunpack.c.l.b16 %v1355
    %v1730 = vunpack.c.h.b16 %v1355
    %v1731 = vunpack.c.l.b16 %v1356
    %v1732 = vunpack.c.h.b16 %v1356
    %v1733 = vunpack.c.l.b16 %v1357
    %v1734 = vunpack.c.h.b16 %v1357
    %v1735 = vunpack.c.l.b16 %v1358
    %v1736 = vunpack.c.h.b16 %v1358
    %v1737 = vunpack.c.l.b16 %v1359
    %v1738 = vunpack.c.h.b16 %v1359
    %v1739 = vunpack.c.l.b16 %v1360
    %v1740 = vunpack.c.h.b16 %v1360
    %v1741 = vunpack.c.l.b16 %v1361
    %v1742 = vunpack.c.h.b16 %v1361
    %v1743 = vunpack.c.l.b16 %v1362
    %v1744 = vunpack.c.h.b16 %v1362
    %v1745 = vunpack.c.l.b16 %v1363
    %v1746 = vunpack.c.h.b16 %v1363
    %v1747 = vunpack.c.l.b16 %v1364
    %v1748 = vunpack.c.h.b16 %v1364
    %v1749 = vunpack.c.l.b16 %v1365
    %v1750 = vunpack.c.h.b16 %v1365
    %v1751 = vunpack.c.l.b16 %v1366
    %v1752 = vunpack.c.h.b16 %v1366
    %v1753 = vunpack.c.l.b16 %v1367
    %v1754 = vunpack.c.h.b16 %v1367
    %v1755 = vunpack.c.l.b16 %v1368
    %v1756 = vunpack.c.h.b16 %v1368
    %v1757 = vunpack.c.l.b16 %v1369
    %v1758 = vunpack.c.h.b16 %v1369
    %v1759 = vunpack.c.l.b16 %v1370
    %v1760 = vunpack.c.h.b16 %v1370
    %v1761 = vunpack.c.l.b16 %v1371
    %v1762 = vunpack.c.h.b16 %v1371
    %v1763 = vunpack.c.l.b16 %v1372
    %v1764 = vunpack.c.h.b16 %v1372
    %v1765 = vunpack.c.l.b16 %v1373
    %v1766 = vunpack.c.h.b16 %v1373
    %v1767 = vunpack.c.l.b16 %v1374
    %v1768 = vunpack.c.h.b16 %v1374
    %v1769 = vunpack.c.l.b16 %v1375
    %v1770 = vunpack.c.h.b16 %v1375
    %v1771 = vunpack.c.l.b16 %v1376
    %v1772 = vunpack.c.h.b16 %v1376
    %v1773 = vunpack.c.l.b16 %v1377
    %v1774 = vunpack.c.h.b16 %v1377
    %v1775 = vunpack.c.l.b16 %v1378
    %v1776 = vunpack.c.h.b16 %v1378
    %v1777 = vunpack.c.l.b16 %v1379
    %v1778 = vunpack.c.h.b16 %v1379
    %v1779 = vunpack.c.l.b16 %v1380
    %v1780 = vunpack.c.h.b16 %v1380
    %v1781 = vunpack.c.l.b16 %v1381
    %v1782 = vunpack.c.h.b16 %v1381
    %v1783 = vunpack.c.l.b16 %v1382
    %v1784 = vunpack.c.h.b16 %v1382
    %v1785 = vunpack.c.l.b16 %v1383
    %v1786 = vunpack.c.h.b16 %v1383
    %v1787 = vunpack.c.l.b16 %v1384
    %v1788 = vunpack.c.h.b16 %v1384
    %v1789 = vunpack.c.l.b16 %v1385
    %v1790 = vunpack.c.h.b16 %v1385
    %v1791 = vunpack.c.l.b16 %v1386
    %v1792 = vunpack.c.h.b16 %v1386
    %v1793 = vpack.c.b16 %v1541, %v1537
    %v1794 = vpack.c.b16 %v1542, %v1538
    %v1795 = vpack.c.b16 %v1543, %v1539
    %v1796 = vpack.c.b16 %v1544, %v1540
    %v1797 = vpack.c.b16 %v1549, %v1545
    %v1798 = vpack.c.b16 %v1550, %v1546
    %v1799 = vpack.c.b16 %v1551, %v1547
    %v1800 = vpack.c.b16 %v1552, %v1548
    %v1801 = vpack.c.b16 %v1557, %v1553
    %v1802 = vpack.c.b16 %v1558, %v1554
    %v1803 = vpack.c.b16 %v1559, %v1555
    %v1804 = vpack.c.b16 %v1560, %v1556
    %v1805 = vpack.c.b16 %v1565, %v1561
    %v1806 = vpack.c.b16 %v1566, %v1562
    %v1807 = vpack.c.b16 %v1567, %v1563
    %v1808 = vpack.c.b16 %v1568, %v1564
    %v1809 = vpack.c.b16 %v1573, %v1569
    %v1810 = vpack.c.b16 %v1574, %v1570
    %v1811 = vpack.c.b16 %v1575, %v1571
    %v1812 = vpack.c.b16 %v1576, %v1572
    %v1813 = vpack.c.b16 %v1581, %v1577
    %v1814 = vpack.c.b16 %v1582, %v1578
    %v1815 = vpack.c.b16 %v1583, %v1579
    %v1816 = vpack.c.b16 %v1584, %v1580
    %v1817 = vpack.c.b16 %v1589, %v1585
    %v1818 = vpack.c.b16 %v1590, %v1586
    %v1819 = vpack.c.b16 %v1591, %v1587
    %v1820 = vpack.c.b16 %v1592, %v1588
    %v1821 = vpack.c.b16 %v1597, %v1593
    %v1822 = vpack.c.b16 %v1598, %v1594
    %v1823 = vpack.c.b16 %v1599, %v1595
    %v1824 = vpack.c.b16 %v1600, %v1596
    %v1825 = vpack.c.b16 %v1605, %v1601
    %v1826 = vpack.c.b16 %v1606, %v1602
    %v1827 = vpack.c.b16 %v1607, %v1603
    %v1828 = vpack.c.b16 %v1608, %v1604
    %v1829 = vpack.c.b16 %v1613, %v1609
    %v1830 = vpack.c.b16 %v1614, %v1610
    %v1831 = vpack.c.b16 %v1615, %v1611
    %v1832 = vpack.c.b16 %v1616, %v1612
    %v1833 = vpack.c.b16 %v1621, %v1617
    %v1834 = vpack.c.b16 %v1622, %v1618
    %v1835 = vpack.c.b16 %v1623, %v1619
    %v1836 = vpack.c.b16 %v1624, %v1620
    %v1837 = vpack.c.b16 %v1629, %v1625
    %v1838 = vpack.c.b16 %v1630, %v1626
    %v1839 = vpack.c.b16 %v1631, %v1627
    %v1840 = vpack.c.b16 %v1632, %v1628
    %v1841 = vpack.c.b16 %v1637, %v1633
    %v1842 = vpack.c.b16 %v1638, %v1634
    %v1843 = vpack.c.b16 %v1639, %v1635
    %v1844 = vpack.c.b16 %v1640, %v1636
    %v1845 = vpack.c.b16 %v1645, %v1641
    %v1846 = vpack.c.b16 %v1646, %v1642
    %v1847 = vpack.c.b16 %v1647, %v1643
    %v1848 = vpack.c.b16 %v1648, %v1644
    %v1849 = vpack.c.b16 %v1653, %v1649
    %v1850 = vpack.c.b16 %v1654, %v1650
    %v1851 = vpack.c.b16 %v1655, %v1651
    %v1852 = vpack.c.b16 %v1656, %v1652
    %v1853 = vpack.c.b16 %v1661, %v1657
    %v1854 = vpack.c.b16 %v1662, %v1658
    %v1855 = vpack.c.b16 %v1663, %v1659
    %v1856 = vpack.c.b16 %v1664, %v1660
    %v1857 = vpack.c.b16 %v1669, %v1665
    %v1858 = vpack.c.b16 %v1670, %v1666
    %v1859 = vpack.c.b16 %v1671, %v1667
    %v1860 = vpack.c.b16 %v1672, %v1668
    %v1861 = vpack.c.b16 %v1677, %v1673
    %v1862 = vpack.c.b16 %v1678, %v1674
    %v1863 = vpack.c.b16 %v1679, %v1675
    %v1864 = vpack.c.b16 %v1680, %v1676
    %v1865 = vpack.c.b16 %v1685, %v1681
    %v1866 = vpack.c.b16 %v1686, %v1682
    %v1867 = vpack.c.b16 %v1687, %v1683
    %v1868 = vpack.c.b16 %v1688, %v1684
    %v1869 = vpack.c.b16 %v1693, %v1689
    %v1870 = vpack.c.b16 %v1694, %v1690
    %v1871 = vpack.c.b16 %v1695, %v1691
    %v1872 = vpack.c.b16 %v1696, %v1692
    %v1873 = vpack.c.b16 %v1701, %v1697
    %v1874 = vpack.c.b16 %v1702, %v1698
    %v1875 = vpack.c.b16 %v1703, %v1699
    %v1876 = vpack.c.b16 %v1704, %v1700
    %v1877 = vpack.c.b16 %v1709, %v1705
    %v1878 = vpack.c.b16 %v1710, %v1706
    %v1879 = vpack.c.b16 %v1711, %v1707
    %v1880 = vpack.c.b16 %v1712, %v1708
    %v1881 = vpack.c.b16 %v1717, %v1713
    %v1882 = vpack.c.b16 %v1718, %v1714
    %v1883 = vpack.c.b16 %v1719, %v1715
    %v1884 = vpack.c.b16 %v1720, %v1716
    %v1885 = vpack.c.b16 %v1725, %v1721
    %v1886 = vpack.c.b16 %v1726, %v1722
    %v1887 = vpack.c.b16 %v1727, %v1723
    %v1888 = vpack.c.b16 %v1728, %v1724
    %v1889 = vpack.c.b16 %v1733, %v1729
    %v1890 = vpack.c.b16 %v1734, %v1730
    %v1891 = vpack.c.b16 %v1735, %v1731
    %v1892 = vpack.c.b16 %v1736, %v1732
    %v1893 = vpack.c.b16 %v1741, %v1737
    %v1894 = vpack.c.b16 %v1742, %v1738
    %v1895 = vpack.c.b16 %v1743, %v1739
    %v1896 = vpack.c.b16 %v1744, %v1740
    %v1897 = vpack.c.b16 %v1749, %v1745
    %v1898 = vpack.c.b16 %v1750, %v1746
    %v1899 = vpack.c.b16 %v1751, %v1747
    %v1900 = vpack.c.b16 %v1752, %v1748
    %v1901 = vpack.c.b16 %v1757, %v1753
    %v1902 = vpack.c.b16 %v1758, %v1754
    %v1903 = vpack.c.b16 %v1759, %v1755
    %v1904 = vpack.c.b16 %v1760, %v1756
    %v1905 = vpack.c.b16 %v1765, %v1761
    %v1906 = vpack.c.b16 %v1766, %v1762
    %v1907 = vpack.c.b16 %v1767, %v1763
    %v1908 = vpack.c.b16 %v1768, %v1764
    %v1909 = vpack.c.b16 %v1773, %v1769
    %v1910 = vpack.c.b16 %v1774, %v1770
    %v1911 = vpack.c.b16 %v1775, %v1771
    %v1912 = vpack.c.b16 %v1776, %v1772
    %v1913 = vpack.c.b16 %v1781, %v1777
    %v1914 = vpack.c.b16 %v1782, %v1778
    %v1915 = vpack.c.b16 %v1783, %v1779
    %v1916 = vpack.c.b16 %v1784, %v1780
    %v1917 = vpack.c.b16 %v1789, %v1785
    %v1918 = vpack.c.b16 %v1790, %v1786
    %v1919 = vpack.c.b16 %v1791, %v1787
    %v1920 = vpack.c.b16 %v1792, %v1788
    %2049 = vmatprep.subr.bf16.mxu0 %v1822
    %2050 = vmatpush1.bf16.msra.mxu0 %v1821
    %2051 = vmatprep.subr.bf16.mxu0 %v1818
    %2052 = vmatpush1.bf16.msra.mxu0 %v1817
    %2053 = vmatprep.subr.bf16.mxu0 %v1814
    %2054 = vmatpush1.bf16.msra.mxu0 %v1813
    %2055 = vmatprep.subr.bf16.mxu0 %v1810
    %2056 = vmatpush1.bf16.msra.mxu0 %v1809
    %2057 = vmatprep.subr.bf16.mxu0 %v1806
    %2058 = vmatpush1.bf16.msra.mxu0 %v1805
    %2059 = vmatprep.subr.bf16.mxu0 %v1802
    %2060 = vmatpush1.bf16.msra.mxu0 %v1801
    %2061 = vmatprep.subr.bf16.mxu0 %v1798
    %2062 = vmatpush1.bf16.msra.mxu0 %v1797
    %2063 = vmatprep.subr.bf16.mxu0 %v1794
    %2064 = vmatpush1.bf16.msra.mxu0 %v1793
    %2065 = vmatprep.subr.bf16.mxu0 %v1854
    %2066 = vmatpush2.bf16.msra.mxu0 %v1853
    %2067 = vmatprep.subr.bf16.mxu0 %v1850
    %2068 = vmatpush2.bf16.msra.mxu0 %v1849
    %2069 = vmatprep.subr.bf16.mxu0 %v1846
    %2070 = vmatpush2.bf16.msra.mxu0 %v1845
    %2071 = vmatprep.subr.bf16.mxu0 %v1842
    %2072 = vmatpush2.bf16.msra.mxu0 %v1841
    %2073 = vmatprep.subr.bf16.mxu0 %v1838
    %2074 = vmatpush2.bf16.msra.mxu0 %v1837
    %2075 = vmatprep.subr.bf16.mxu0 %v1834
    %2076 = vmatpush2.bf16.msra.mxu0 %v1833
    %2077 = vmatprep.subr.bf16.mxu0 %v1830
    %2078 = vmatpush2.bf16.msra.mxu0 %v1829
    %2079 = vmatprep.subr.bf16.mxu0 %v1826
    %2080 = vmatpush2.bf16.msra.mxu0 %v1825
    %2081 = vmatprep.mubr.bf16.mxu0 %v1256
    %2082 = vmatmul.mubr.bf16.gmra.mxu0 %v1255
    %v2083 = vpop.f32.mrf.mxu0
    %v2084 = vadd.f32 %v1392, %v2083
    %v2085 = vpop.f32.mrf.mxu0
    %v2086 = vadd.f32 %v1396, %v2085
    %v2087 = vpop.f32.mrf.mxu0
    %v2088 = vadd.f32 %v1392, %v2087
    %v2089 = vpop.f32.mrf.mxu0
    %v2090 = vadd.f32 %v1396, %v2089
    %2091 = vdwg.mxu0
    %2092 = vmatprep.subr.bf16.mxu0 %v1886
    %2093 = vmatpush1.bf16.msra.mxu0 %v1885
    %2094 = vmatprep.subr.bf16.mxu0 %v1882
    %2095 = vmatpush1.bf16.msra.mxu0 %v1881
    %2096 = vmatprep.subr.bf16.mxu0 %v1878
    %2097 = vmatpush1.bf16.msra.mxu0 %v1877
    %2098 = vmatprep.subr.bf16.mxu0 %v1874
    %2099 = vmatpush1.bf16.msra.mxu0 %v1873
    %2100 = vmatprep.subr.bf16.mxu0 %v1870
    %2101 = vmatpush1.bf16.msra.mxu0 %v1869
    %2102 = vmatprep.subr.bf16.mxu0 %v1866
    %2103 = vmatpush1.bf16.msra.mxu0 %v1865
    %2104 = vmatprep.subr.bf16.mxu0 %v1862
    %2105 = vmatpush1.bf16.msra.mxu0 %v1861
    %2106 = vmatprep.subr.bf16.mxu0 %v1858
    %2107 = vmatpush1.bf16.msra.mxu0 %v1857
    %2108 = vmatprep.subr.bf16.mxu0 %v1918
    %2109 = vmatpush2.bf16.msra.mxu0 %v1917
    %2110 = vmatprep.subr.bf16.mxu0 %v1914
    %2111 = vmatpush2.bf16.msra.mxu0 %v1913
    %2112 = vmatprep.subr.bf16.mxu0 %v1910
    %2113 = vmatpush2.bf16.msra.mxu0 %v1909
    %2114 = vmatprep.subr.bf16.mxu0 %v1906
    %2115 = vmatpush2.bf16.msra.mxu0 %v1905
    %2116 = vmatprep.subr.bf16.mxu0 %v1902
    %2117 = vmatpush2.bf16.msra.mxu0 %v1901
    %2118 = vmatprep.subr.bf16.mxu0 %v1898
    %2119 = vmatpush2.bf16.msra.mxu0 %v1897
    %2120 = vmatprep.subr.bf16.mxu0 %v1894
    %2121 = vmatpush2.bf16.msra.mxu0 %v1893
    %2122 = vmatprep.subr.bf16.mxu0 %v1890
    %2123 = vmatpush2.bf16.msra.mxu0 %v1889
    %2124 = vmatprep.mubr.bf16.mxu0 %v1258
    %2125 = vmatmul.mubr.bf16.gmra.mxu0 %v1257
    %v2126 = vpop.f32.mrf.mxu0
    %v2127 = vadd.f32 %v2084, %v2126
    %v2128 = vpop.f32.mrf.mxu0
    %v2129 = vadd.f32 %v2086, %v2128
    %v2130 = vpop.f32.mrf.mxu0
    %v2131 = vadd.f32 %v2088, %v2130
    %v2132 = vpop.f32.mrf.mxu0
    %v2133 = vadd.f32 %v2090, %v2132
    %2134 = vdwg.mxu0
    %2135 = vmatprep.subr.bf16.mxu0 %v1824
    %2136 = vmatpush1.bf16.msra.mxu0 %v1823
    %2137 = vmatprep.subr.bf16.mxu0 %v1820
    %2138 = vmatpush1.bf16.msra.mxu0 %v1819
    %2139 = vmatprep.subr.bf16.mxu0 %v1816
    %2140 = vmatpush1.bf16.msra.mxu0 %v1815
    %2141 = vmatprep.subr.bf16.mxu0 %v1812
    %2142 = vmatpush1.bf16.msra.mxu0 %v1811
    %2143 = vmatprep.subr.bf16.mxu0 %v1808
    %2144 = vmatpush1.bf16.msra.mxu0 %v1807
    %2145 = vmatprep.subr.bf16.mxu0 %v1804
    %2146 = vmatpush1.bf16.msra.mxu0 %v1803
    %2147 = vmatprep.subr.bf16.mxu0 %v1800
    %2148 = vmatpush1.bf16.msra.mxu0 %v1799
    %2149 = vmatprep.subr.bf16.mxu0 %v1796
    %2150 = vmatpush1.bf16.msra.mxu0 %v1795
    %2151 = vmatprep.subr.bf16.mxu0 %v1856
    %2152 = vmatpush2.bf16.msra.mxu0 %v1855
    %2153 = vmatprep.subr.bf16.mxu0 %v1852
    %2154 = vmatpush2.bf16.msra.mxu0 %v1851
    %2155 = vmatprep.subr.bf16.mxu0 %v1848
    %2156 = vmatpush2.bf16.msra.mxu0 %v1847
    %2157 = vmatprep.subr.bf16.mxu0 %v1844
    %2158 = vmatpush2.bf16.msra.mxu0 %v1843
    %2159 = vmatprep.subr.bf16.mxu0 %v1840
    %2160 = vmatpush2.bf16.msra.mxu0 %v1839
    %2161 = vmatprep.subr.bf16.mxu0 %v1836
    %2162 = vmatpush2.bf16.msra.mxu0 %v1835
    %2163 = vmatprep.subr.bf16.mxu0 %v1832
    %2164 = vmatpush2.bf16.msra.mxu0 %v1831
    %2165 = vmatprep.subr.bf16.mxu0 %v1828
    %2166 = vmatpush2.bf16.msra.mxu0 %v1827
    %2167 = vmatprep.mubr.bf16.mxu0 %v1256
    %2168 = vmatmul.mubr.bf16.gmra.mxu0 %v1255
    %v2169 = vpop.f32.mrf.mxu0
    %v2170 = vadd.f32 %v1400, %v2169
    %v2171 = vpop.f32.mrf.mxu0
    %v2172 = vadd.f32 %v1404, %v2171
    %v2173 = vpop.f32.mrf.mxu0
    %v2174 = vadd.f32 %v1400, %v2173
    %v2175 = vpop.f32.mrf.mxu0
    %v2176 = vadd.f32 %v1404, %v2175
    %2177 = vdwg.mxu0
    %2178 = vmatprep.subr.bf16.mxu0 %v1888
    %2179 = vmatpush1.bf16.msra.mxu0 %v1887
    %2180 = vmatprep.subr.bf16.mxu0 %v1884
    %2181 = vmatpush1.bf16.msra.mxu0 %v1883
    %2182 = vmatprep.subr.bf16.mxu0 %v1880
    %2183 = vmatpush1.bf16.msra.mxu0 %v1879
    %2184 = vmatprep.subr.bf16.mxu0 %v1876
    %2185 = vmatpush1.bf16.msra.mxu0 %v1875
    %2186 = vmatprep.subr.bf16.mxu0 %v1872
    %2187 = vmatpush1.bf16.msra.mxu0 %v1871
    %2188 = vmatprep.subr.bf16.mxu0 %v1868
    %2189 = vmatpush1.bf16.msra.mxu0 %v1867
    %2190 = vmatprep.subr.bf16.mxu0 %v1864
    %2191 = vmatpush1.bf16.msra.mxu0 %v1863
    %2192 = vmatprep.subr.bf16.mxu0 %v1860
    %2193 = vmatpush1.bf16.msra.mxu0 %v1859
    %2194 = vmatprep.subr.bf16.mxu0 %v1920
    %2195 = vmatpush2.bf16.msra.mxu0 %v1919
    %2196 = vmatprep.subr.bf16.mxu0 %v1916
    %2197 = vmatpush2.bf16.msra.mxu0 %v1915
    %2198 = vmatprep.subr.bf16.mxu0 %v1912
    %2199 = vmatpush2.bf16.msra.mxu0 %v1911
    %2200 = vmatprep.subr.bf16.mxu0 %v1908
    %2201 = vmatpush2.bf16.msra.mxu0 %v1907
    %2202 = vmatprep.subr.bf16.mxu0 %v1904
    %2203 = vmatpush2.bf16.msra.mxu0 %v1903
    %2204 = vmatprep.subr.bf16.mxu0 %v1900
    %2205 = vmatpush2.bf16.msra.mxu0 %v1899
    %2206 = vmatprep.subr.bf16.mxu0 %v1896
    %2207 = vmatpush2.bf16.msra.mxu0 %v1895
    %2208 = vmatprep.subr.bf16.mxu0 %v1892
    %2209 = vmatpush2.bf16.msra.mxu0 %v1891
    %2210 = vmatprep.mubr.bf16.mxu0 %v1258
    %2211 = vmatmul.mubr.bf16.gmra.mxu0 %v1257
    %v2212 = vpop.f32.mrf.mxu0
    %v2213 = vadd.f32 %v2170, %v2212
    %v2214 = vpop.f32.mrf.mxu0
    %v2215 = vadd.f32 %v2172, %v2214
    %v2216 = vpop.f32.mrf.mxu0
    %v2217 = vadd.f32 %v2174, %v2216
    %v2218 = vpop.f32.mrf.mxu0
    %v2219 = vadd.f32 %v2176, %v2218
    %2220 = vdwg.mxu0
    %v2221 = vmax.f32 %v2127, 0.0
    %v2222 = vmax.f32 %v2129, 0.0
    %v2223 = vmax.f32 %v2213, 0.0
    %v2224 = vmax.f32 %v2215, 0.0
    %v2225 = vmax.f32 %v2131, 0.0
    %v2226 = vmax.f32 %v2133, 0.0
    %v2227 = vmax.f32 %v2217, 0.0
    %v2228 = vmax.f32 %v2219, 0.0
    %v2229 = vpack.c.bf16 %v2225, %v2221
    %v2230 = vpack.c.bf16 %v2226, %v2222
    %v2231 = vpack.c.bf16 %v2227, %v2223
    %v2232 = vpack.c.bf16 %v2228, %v2224
    %v2233 = vld [vmem:[#allocation11] sm:$0xf]
    %v2234 = vld [vmem:[#allocation11 + $0x4] sm:$0xf]
    %v2235 = vld [vmem:[#allocation11 + $0x8] sm:$0xf]
    %v2236 = vld [vmem:[#allocation11 + $0xc] sm:$0xf]
    %v2237 = vld [vmem:[#allocation11 + $0x10] sm:$0xf]
    %v2238 = vld [vmem:[#allocation11 + $0x14] sm:$0xf]
    %v2239 = vld [vmem:[#allocation11 + $0x18] sm:$0xf]
    %v2240 = vld [vmem:[#allocation11 + $0x1c] sm:$0xf]
    %v2241 = vld [vmem:[#allocation11 + $0x20] sm:$0xf]
    %v2242 = vld [vmem:[#allocation11 + $0x24] sm:$0xf]
    %v2243 = vld [vmem:[#allocation11 + $0x28] sm:$0xf]
    %v2244 = vld [vmem:[#allocation11 + $0x2c] sm:$0xf]
    %v2245 = vld [vmem:[#allocation11 + $0x30] sm:$0xf]
    %v2246 = vld [vmem:[#allocation11 + $0x34] sm:$0xf]
    %v2247 = vld [vmem:[#allocation11 + $0x38] sm:$0xf]
    %v2248 = vld [vmem:[#allocation11 + $0x3c] sm:$0xf]
    %v2249 = vld [vmem:[#allocation11 + $0x40] sm:$0xf]
    %v2250 = vld [vmem:[#allocation11 + $0x44] sm:$0xf]
    %v2251 = vld [vmem:[#allocation11 + $0x48] sm:$0xf]
    %v2252 = vld [vmem:[#allocation11 + $0x4c] sm:$0xf]
    %v2253 = vld [vmem:[#allocation11 + $0x50] sm:$0xf]
    %v2254 = vld [vmem:[#allocation11 + $0x54] sm:$0xf]
    %v2255 = vld [vmem:[#allocation11 + $0x58] sm:$0xf]
    %v2256 = vld [vmem:[#allocation11 + $0x5c] sm:$0xf]
    %v2257 = vld [vmem:[#allocation11 + $0x60] sm:$0xf]
    %v2258 = vld [vmem:[#allocation11 + $0x64] sm:$0xf]
    %v2259 = vld [vmem:[#allocation11 + $0x68] sm:$0xf]
    %v2260 = vld [vmem:[#allocation11 + $0x6c] sm:$0xf]
    %v2261 = vld [vmem:[#allocation11 + $0x70] sm:$0xf]
    %v2262 = vld [vmem:[#allocation11 + $0x74] sm:$0xf]
    %v2263 = vld [vmem:[#allocation11 + $0x78] sm:$0xf]
    %v2264 = vld [vmem:[#allocation11 + $0x7c] sm:$0xf]
    %v2265 = vld [vmem:[#allocation11 + $0x80] sm:$0xf]
    %v2266 = vld [vmem:[#allocation11 + $0x84] sm:$0xf]
    %v2267 = vld [vmem:[#allocation11 + $0x88] sm:$0xf]
    %v2268 = vld [vmem:[#allocation11 + $0x8c] sm:$0xf]
    %v2269 = vld [vmem:[#allocation11 + $0x90] sm:$0xf]
    %v2270 = vld [vmem:[#allocation11 + $0x94] sm:$0xf]
    %v2271 = vld [vmem:[#allocation11 + $0x98] sm:$0xf]
    %v2272 = vld [vmem:[#allocation11 + $0x9c] sm:$0xf]
    %v2273 = vld [vmem:[#allocation11 + $0xa0] sm:$0xf]
    %v2274 = vld [vmem:[#allocation11 + $0xa4] sm:$0xf]
    %v2275 = vld [vmem:[#allocation11 + $0xa8] sm:$0xf]
    %v2276 = vld [vmem:[#allocation11 + $0xac] sm:$0xf]
    %v2277 = vld [vmem:[#allocation11 + $0xb0] sm:$0xf]
    %v2278 = vld [vmem:[#allocation11 + $0xb4] sm:$0xf]
    %v2279 = vld [vmem:[#allocation11 + $0xb8] sm:$0xf]
    %v2280 = vld [vmem:[#allocation11 + $0xbc] sm:$0xf]
    %v2281 = vld [vmem:[#allocation11 + $0xc0] sm:$0xf]
    %v2282 = vld [vmem:[#allocation11 + $0xc4] sm:$0xf]
    %v2283 = vld [vmem:[#allocation11 + $0xc8] sm:$0xf]
    %v2284 = vld [vmem:[#allocation11 + $0xcc] sm:$0xf]
    %v2285 = vld [vmem:[#allocation11 + $0xd0] sm:$0xf]
    %v2286 = vld [vmem:[#allocation11 + $0xd4] sm:$0xf]
    %v2287 = vld [vmem:[#allocation11 + $0xd8] sm:$0xf]
    %v2288 = vld [vmem:[#allocation11 + $0xdc] sm:$0xf]
    %v2289 = vld [vmem:[#allocation11 + $0xe0] sm:$0xf]
    %v2290 = vld [vmem:[#allocation11 + $0xe4] sm:$0xf]
    %v2291 = vld [vmem:[#allocation11 + $0xe8] sm:$0xf]
    %v2292 = vld [vmem:[#allocation11 + $0xec] sm:$0xf]
    %v2293 = vld [vmem:[#allocation11 + $0xf0] sm:$0xf]
    %v2294 = vld [vmem:[#allocation11 + $0xf4] sm:$0xf]
    %v2295 = vld [vmem:[#allocation11 + $0xf8] sm:$0xf]
    %v2296 = vld [vmem:[#allocation11 + $0xfc] sm:$0xf]
    %v2297 = vld [vmem:[%s8] sm:$0x1]
    %v2299 = vlaneseq
    %v2300 = vshrl.u32 %v2299, 7
    %v2301 = vsub.s32 0, %v2300
    %v2302 = vrot.slane %v2297, %v2301
    %v2368 = vunpack.c.l.b16 %v2233
    %v2369 = vunpack.c.l.b16 %v2234
    %v2370 = vunpack.c.l.b16 %v2235
    %v2371 = vunpack.c.l.b16 %v2236
    %v2372 = vunpack.c.l.b16 %v2237
    %v2373 = vunpack.c.l.b16 %v2238
    %v2374 = vunpack.c.l.b16 %v2239
    %v2375 = vunpack.c.l.b16 %v2240
    %v2376 = vunpack.c.l.b16 %v2241
    %v2377 = vunpack.c.l.b16 %v2242
    %v2378 = vunpack.c.l.b16 %v2243
    %v2379 = vunpack.c.l.b16 %v2244
    %v2380 = vunpack.c.l.b16 %v2245
    %v2381 = vunpack.c.l.b16 %v2246
    %v2382 = vunpack.c.l.b16 %v2247
    %v2383 = vunpack.c.l.b16 %v2248
    %v2384 = vunpack.c.l.b16 %v2249
    %v2385 = vunpack.c.l.b16 %v2250
    %v2386 = vunpack.c.l.b16 %v2251
    %v2387 = vunpack.c.l.b16 %v2252
    %v2388 = vunpack.c.l.b16 %v2253
    %v2389 = vunpack.c.l.b16 %v2254
    %v2390 = vunpack.c.l.b16 %v2255
    %v2391 = vunpack.c.l.b16 %v2256
    %v2392 = vunpack.c.l.b16 %v2257
    %v2393 = vunpack.c.l.b16 %v2258
    %v2394 = vunpack.c.l.b16 %v2259
    %v2395 = vunpack.c.l.b16 %v2260
    %v2396 = vunpack.c.l.b16 %v2261
    %v2397 = vunpack.c.l.b16 %v2262
    %v2398 = vunpack.c.l.b16 %v2263
    %v2399 = vunpack.c.l.b16 %v2264
    %v2400 = vunpack.c.l.b16 %v2265
    %v2401 = vunpack.c.l.b16 %v2266
    %v2402 = vunpack.c.l.b16 %v2267
    %v2403 = vunpack.c.l.b16 %v2268
    %v2404 = vunpack.c.l.b16 %v2269
    %v2405 = vunpack.c.l.b16 %v2270
    %v2406 = vunpack.c.l.b16 %v2271
    %v2407 = vunpack.c.l.b16 %v2272
    %v2408 = vunpack.c.l.b16 %v2273
    %v2409 = vunpack.c.l.b16 %v2274
    %v2410 = vunpack.c.l.b16 %v2275
    %v2411 = vunpack.c.l.b16 %v2276
    %v2412 = vunpack.c.l.b16 %v2277
    %v2413 = vunpack.c.l.b16 %v2278
    %v2414 = vunpack.c.l.b16 %v2279
    %v2415 = vunpack.c.l.b16 %v2280
    %v2416 = vunpack.c.l.b16 %v2281
    %v2417 = vunpack.c.l.b16 %v2282
    %v2418 = vunpack.c.l.b16 %v2283
    %v2419 = vunpack.c.l.b16 %v2284
    %v2420 = vunpack.c.l.b16 %v2285
    %v2421 = vunpack.c.l.b16 %v2286
    %v2422 = vunpack.c.l.b16 %v2287
    %v2423 = vunpack.c.l.b16 %v2288
    %v2424 = vunpack.c.l.b16 %v2289
    %v2425 = vunpack.c.l.b16 %v2290
    %v2426 = vunpack.c.l.b16 %v2291
    %v2427 = vunpack.c.l.b16 %v2292
    %v2428 = vunpack.c.l.b16 %v2293
    %v2429 = vunpack.c.l.b16 %v2294
    %v2430 = vunpack.c.l.b16 %v2295
    %v2431 = vunpack.c.l.b16 %v2296
    %v2432 = vpack.c.b16 %v2369, %v2368
    %v2433 = vpack.c.b16 %v2371, %v2370
    %v2434 = vpack.c.b16 %v2373, %v2372
    %v2435 = vpack.c.b16 %v2375, %v2374
    %v2436 = vpack.c.b16 %v2377, %v2376
    %v2437 = vpack.c.b16 %v2379, %v2378
    %v2438 = vpack.c.b16 %v2381, %v2380
    %v2439 = vpack.c.b16 %v2383, %v2382
    %v2440 = vpack.c.b16 %v2385, %v2384
    %v2441 = vpack.c.b16 %v2387, %v2386
    %v2442 = vpack.c.b16 %v2389, %v2388
    %v2443 = vpack.c.b16 %v2391, %v2390
    %v2444 = vpack.c.b16 %v2393, %v2392
    %v2445 = vpack.c.b16 %v2395, %v2394
    %v2446 = vpack.c.b16 %v2397, %v2396
    %v2447 = vpack.c.b16 %v2399, %v2398
    %v2448 = vpack.c.b16 %v2401, %v2400
    %v2449 = vpack.c.b16 %v2403, %v2402
    %v2450 = vpack.c.b16 %v2405, %v2404
    %v2451 = vpack.c.b16 %v2407, %v2406
    %v2452 = vpack.c.b16 %v2409, %v2408
    %v2453 = vpack.c.b16 %v2411, %v2410
    %v2454 = vpack.c.b16 %v2413, %v2412
    %v2455 = vpack.c.b16 %v2415, %v2414
    %v2456 = vpack.c.b16 %v2417, %v2416
    %v2457 = vpack.c.b16 %v2419, %v2418
    %v2458 = vpack.c.b16 %v2421, %v2420
    %v2459 = vpack.c.b16 %v2423, %v2422
    %v2460 = vpack.c.b16 %v2425, %v2424
    %v2461 = vpack.c.b16 %v2427, %v2426
    %v2462 = vpack.c.b16 %v2429, %v2428
    %v2463 = vpack.c.b16 %v2431, %v2430
    %2496 = vmatprep.subr.bf16.mxu0 0
    %2497 = vmatpush1.bf16.msra.mxu0 %v2439
    %2498 = vmatprep.subr.bf16.mxu0 0
    %2499 = vmatpush1.bf16.msra.mxu0 %v2438
    %2500 = vmatprep.subr.bf16.mxu0 0
    %2501 = vmatpush1.bf16.msra.mxu0 %v2437
    %2502 = vmatprep.subr.bf16.mxu0 0
    %2503 = vmatpush1.bf16.msra.mxu0 %v2436
    %2504 = vmatprep.subr.bf16.mxu0 0
    %2505 = vmatpush1.bf16.msra.mxu0 %v2435
    %2506 = vmatprep.subr.bf16.mxu0 0
    %2507 = vmatpush1.bf16.msra.mxu0 %v2434
    %2508 = vmatprep.subr.bf16.mxu0 0
    %2509 = vmatpush1.bf16.msra.mxu0 %v2433
    %2510 = vmatprep.subr.bf16.mxu0 0
    %2511 = vmatpush1.bf16.msra.mxu0 %v2432
    %2512 = vmatprep.subr.bf16.mxu0 0
    %2513 = vmatpush2.bf16.msra.mxu0 %v2447
    %2514 = vmatprep.subr.bf16.mxu0 0
    %2515 = vmatpush2.bf16.msra.mxu0 %v2446
    %2516 = vmatprep.subr.bf16.mxu0 0
    %2517 = vmatpush2.bf16.msra.mxu0 %v2445
    %2518 = vmatprep.subr.bf16.mxu0 0
    %2519 = vmatpush2.bf16.msra.mxu0 %v2444
    %2520 = vmatprep.subr.bf16.mxu0 0
    %2521 = vmatpush2.bf16.msra.mxu0 %v2443
    %2522 = vmatprep.subr.bf16.mxu0 0
    %2523 = vmatpush2.bf16.msra.mxu0 %v2442
    %2524 = vmatprep.subr.bf16.mxu0 0
    %2525 = vmatpush2.bf16.msra.mxu0 %v2441
    %2526 = vmatprep.subr.bf16.mxu0 0
    %2527 = vmatpush2.bf16.msra.mxu0 %v2440
    %2528 = vmatprep.mubr.bf16.mxu0 %v2230
    %2529 = vmatmul.mubr.bf16.gmra.mxu0 %v2229
    %v2530 = vpop.f32.mrf.mxu0
    %v2531 = vadd.f32 %v2302, %v2530
    %v2532 = vpop.f32.mrf.mxu0
    %v2533 = vpop.f32.mrf.mxu0
    %v2534 = vadd.f32 %v2302, %v2533
    %v2535 = vpop.f32.mrf.mxu0
    %2536 = vdwg.mxu0
    %2537 = vmatprep.subr.bf16.mxu0 0
    %2538 = vmatpush1.bf16.msra.mxu0 %v2455
    %2539 = vmatprep.subr.bf16.mxu0 0
    %2540 = vmatpush1.bf16.msra.mxu0 %v2454
    %2541 = vmatprep.subr.bf16.mxu0 0
    %2542 = vmatpush1.bf16.msra.mxu0 %v2453
    %2543 = vmatprep.subr.bf16.mxu0 0
    %2544 = vmatpush1.bf16.msra.mxu0 %v2452
    %2545 = vmatprep.subr.bf16.mxu0 0
    %2546 = vmatpush1.bf16.msra.mxu0 %v2451
    %2547 = vmatprep.subr.bf16.mxu0 0
    %2548 = vmatpush1.bf16.msra.mxu0 %v2450
    %2549 = vmatprep.subr.bf16.mxu0 0
    %2550 = vmatpush1.bf16.msra.mxu0 %v2449
    %2551 = vmatprep.subr.bf16.mxu0 0
    %2552 = vmatpush1.bf16.msra.mxu0 %v2448
    %2553 = vmatprep.subr.bf16.mxu0 0
    %2554 = vmatpush2.bf16.msra.mxu0 %v2463
    %2555 = vmatprep.subr.bf16.mxu0 0
    %2556 = vmatpush2.bf16.msra.mxu0 %v2462
    %2557 = vmatprep.subr.bf16.mxu0 0
    %2558 = vmatpush2.bf16.msra.mxu0 %v2461
    %2559 = vmatprep.subr.bf16.mxu0 0
    %2560 = vmatpush2.bf16.msra.mxu0 %v2460
    %2561 = vmatprep.subr.bf16.mxu0 0
    %2562 = vmatpush2.bf16.msra.mxu0 %v2459
    %2563 = vmatprep.subr.bf16.mxu0 0
    %2564 = vmatpush2.bf16.msra.mxu0 %v2458
    %2565 = vmatprep.subr.bf16.mxu0 0
    %2566 = vmatpush2.bf16.msra.mxu0 %v2457
    %2567 = vmatprep.subr.bf16.mxu0 0
    %2568 = vmatpush2.bf16.msra.mxu0 %v2456
    %2569 = vmatprep.mubr.bf16.mxu0 %v2232
    %2570 = vmatmul.mubr.bf16.gmra.mxu0 %v2231
    %v2571 = vpop.f32.mrf.mxu0
    %v2572 = vadd.f32 %v2531, %v2571
    %v2573 = vpop.f32.mrf.mxu0
    %v2574 = vpop.f32.mrf.mxu0
    %v2575 = vadd.f32 %v2534, %v2574
    %v2576 = vpop.f32.mrf.mxu0
    %2577 = vdwg.mxu0
    %v2578 = vpack.c.bf16 %v2575, %v2572
    %v2580 = vunpack.c.l.b16 %v2578
    %v2581 = vunpack.c.h.b16 %v2578
    %v2582 = vpack.c.b16 %v2580, %v2580
    %v2583 = vpack.c.b16 %v2581, %v2581
    %2586 = vst [vmem:[#allocation13] sm:$0xf] %v2582
    %2587 = vst [vmem:[#allocation13 + $0x4] sm:$0xf] %v2583
    // Predicated region
    $region62: #{tpu_custom_call.1} parent=1 // pred_check
      _
    $region63: #{tpu_custom_call.1} parent=1 // pred_check_branch
      %2589 = sbr.rel (0) target = $region65
    $region64: #{tpu_custom_call.1} parent=1 // pred_region
      %s2591 = ssub.s32 128, 128
      %2592 = vsyncadd [#allocation4], %s2591
      %s2593 = sshll.u32 [#allocation13], 4
      %s2594 = int_to_ptr.vmem [resolvable:$true] %s2593
      %2599 = dma.vmem_to_hbm [thread:$0]  %s2594, 128, %s9, [#allocation4], 64, 64, 4
    $region65: #{tpu_custom_call.1} parent=1 // pred_fallthru
      _
    // Predicated region
    $region66: #{tpu_custom_call.1} parent=1 // pred_check
      _
    $region67: #{tpu_custom_call.1} parent=1 // pred_check_branch
      %2601 = sbr.rel (0) target = $region69
    $region68: #{tpu_custom_call.1} parent=1 // pred_region
      %2602 = dma.done [#allocation4], 128
    $region69: #{tpu_custom_call.1} parent=1 // pred_fallthru
      _
    %2603 = vsyncpa [#allocation3], 1
    %2604 = vsyncpa [#allocation6], 1
    %2605 = vsyncpa [#allocation9], 1
    %2606 = vsyncpa [#allocation12], 1
    %2607 = vsyncpa [#allocation4], 1

</llo_original>
